<compile_context>
chip_gen: v6e
topology: v6e:2x2x1
jax: 0.10.0
libtpu: 0.0.40
codegen_flags: <defaults>
</compile_context>

<pallas_src>
import jax
import jax.numpy as jnp
from jax.experimental import pallas as pl
from jax.experimental.pallas import tpu as pltpu

ALPHA = 0.1  # stands in for args.alpha in the reference script


def _dbdnmf_kernel(x_ref, w1_ref, b1_ref, w2_ref, b2_ref, w3_ref, b3_ref,
                   l_ref, r_ref, o_ref):
    # x_ref: (TM, input_dim) row tile; weights/biases/R are VMEM-resident.
    x = x_ref[...]
    cdtype = x.dtype

    # --- MLP hot path: 3 MXU matmuls (f32 accumulation), bias/ReLU in f32 ---
    h1 = jnp.dot(x, w1_ref[...], preferred_element_type=jnp.float32) + b1_ref[...]
    h1 = jnp.maximum(h1, 0.0).astype(cdtype)

    h2 = jnp.dot(h1, w2_ref[...], preferred_element_type=jnp.float32) + b2_ref[...]
    h2 = jnp.maximum(h2, 0.0).astype(cdtype)

    nn_out = jnp.dot(h2, w3_ref[...], preferred_element_type=jnp.float32) + b3_ref[...]

    # --- low-rank MF term for this row tile; alpha already folded into L ---
    mf = jnp.dot(l_ref[...], r_ref[...], preferred_element_type=jnp.float32)

    o_ref[...] = (nn_out + mf).astype(o_ref.dtype)


def dbdnmf_forward(x, params, *, tm=128, compute_dtype=jnp.bfloat16):
    """x: (N, input_dim) f32 with N == input_dim.  params: dict of f32 weights."""
    n, input_dim = x.shape
    assert n == input_dim, "broadcast in reference forward requires N == input_dim"
    assert n % tm == 0, "demo keeps N a multiple of the row tile"

    hidden_dim = params["w1"].shape[1]
    rank = params["L"].shape[1]
    cd = compute_dtype

    # bf16 operands for the MXU; biases stay f32 (added to f32 accumulators).
    x_c = x.astype(cd)
    w1 = params["w1"].astype(cd)
    w2 = params["w2"].astype(cd)
    w3 = params["w3"].astype(cd)
    b1, b2, b3 = params["b1"], params["b2"], params["b3"]
    # Fold alpha into L once on the host.
    L = (ALPHA * params["L"]).astype(cd)
    R = params["R"].astype(cd)

    grid = (pl.cdiv(n, tm),)

    def row_spec(cols):
        return pl.BlockSpec((tm, cols), lambda i: (i, 0))

    def resident(a):
        return pl.BlockSpec(a.shape, lambda i, _nd=a.ndim: (0,) * _nd)

    out = pl.pallas_call(
        _dbdnmf_kernel,
        out_shape=jax.ShapeDtypeStruct((n, input_dim), jnp.float32),
        grid=grid,
        in_specs=[
            row_spec(input_dim),            # x      : streamed row tiles
            resident(w1), resident(b1),     # layer 1: VMEM-resident
            resident(w2), resident(b2),     # layer 2: VMEM-resident
            resident(w3), resident(b3),     # layer 3: VMEM-resident
            row_spec(rank),                 # L      : streamed row tiles
            resident(R),                    # R      : VMEM-resident
        ],
        out_specs=row_spec(input_dim),
        compiler_params=pltpu.CompilerParams(
            dimension_semantics=("parallel",),   # megacore sharding on v7x
        ),
    )(x_c, w1, b1, w2, b2, w3, b3, L, R)
    return out


def init_params(key, input_dim, hidden_dim, rank):
    ks = jax.random.split(key, 8)
    # Linear weights stored as (in_features, out_features) == PyTorch W^T.
    w1 = jax.random.normal(ks[0], (input_dim, hidden_dim), jnp.float32) * 0.05
    b1 = jax.random.normal(ks[1], (1, hidden_dim), jnp.float32) * 0.05
    w2 = jax.random.normal(ks[2], (hidden_dim, hidden_dim), jnp.float32) * 0.05
    b2 = jax.random.normal(ks[3], (1, hidden_dim), jnp.float32) * 0.05
    w3 = jax.random.normal(ks[4], (hidden_dim, input_dim), jnp.float32) * 0.05
    b3 = jax.random.normal(ks[5], (1, input_dim), jnp.float32) * 0.05
    L = jax.random.normal(ks[6], (input_dim, rank), jnp.float32) * 0.01
    R = jax.random.normal(ks[7], (rank, input_dim), jnp.float32) * 0.01
    return {"w1": w1, "b1": b1, "w2": w2, "b2": b2, "w3": w3, "b3": b3,
            "L": L, "R": R}


def reference_forward(x, p, compute_dtype=jnp.bfloat16):
    """Pure-JAX reference mirroring the kernel's bf16-operand / f32-accum math."""
    cd = compute_dtype
    xc = x.astype(cd)
    w1, w2, w3 = p["w1"].astype(cd), p["w2"].astype(cd), p["w3"].astype(cd)
    L = (ALPHA * p["L"]).astype(cd)
    R = p["R"].astype(cd)
    h1 = jnp.maximum(jnp.dot(xc, w1, preferred_element_type=jnp.float32) + p["b1"], 0.0)
    h2 = jnp.maximum(jnp.dot(h1.astype(cd), w2, preferred_element_type=jnp.float32) + p["b2"], 0.0)
    nn_out = jnp.dot(h2.astype(cd), w3, preferred_element_type=jnp.float32) + p["b3"]
    mf = jnp.dot(L, R, preferred_element_type=jnp.float32)
    return nn_out + mf


if __name__ == "__main__":
    # Lane-dense sizes (multiples of 128) per the performance review; still small.
    input_dim, hidden_dim, rank = 256, 128, 128
    tm = 128  # row tile: multiple of 16 (bf16 sublane packing); grid = (2,)

    key = jax.random.PRNGKey(0)
    kx, kp = jax.random.split(key)

    # x: (input_dim, input_dim) so that `nn_output + alpha * L@R` matches shapes.
    x = jax.random.normal(kx, (input_dim, input_dim), jnp.float32)
    params = init_params(kp, input_dim, hidden_dim, rank)

    out = dbdnmf_forward(x, params, tm=tm, compute_dtype=jnp.bfloat16)
    out = jax.block_until_ready(out)

    ref = reference_forward(x, params, compute_dtype=jnp.bfloat16)
    assert out.shape == (input_dim, input_dim)
    assert out.dtype == jnp.float32
    assert jnp.allclose(out, ref, atol=1e-2, rtol=1e-2), "mismatch vs reference"

    print("KERNEL_OK")
</pallas_src>

<mosaic_0001>
module attributes {stable_mosaic.version = 11 : i64} {
  func.func @_dbdnmf_kernel(%arg0: i32, %arg1: memref<128x256xbf16, #tpu.memory_space<vmem>>, %arg2: memref<256x128xbf16, #tpu.memory_space<vmem>>, %arg3: memref<1x128xf32, #tpu.memory_space<vmem>>, %arg4: memref<128x128xbf16, #tpu.memory_space<vmem>>, %arg5: memref<1x128xf32, #tpu.memory_space<vmem>>, %arg6: memref<128x256xbf16, #tpu.memory_space<vmem>>, %arg7: memref<1x256xf32, #tpu.memory_space<vmem>>, %arg8: memref<128x128xbf16, #tpu.memory_space<vmem>>, %arg9: memref<128x256xbf16, #tpu.memory_space<vmem>>, %arg10: memref<128x256xf32, #tpu.memory_space<vmem>>) attributes {dimension_semantics = [#tpu.dimension_semantics<parallel>], iteration_bounds = array<i64: 2>, scalar_prefetch = 0 : i64, scratch_operands = 0 : i64, tpu.core_type = #tpu.core_type<tc>, window_params = [{transform_indices = @transform_0, window_bounds = array<i64: 128, 256>}, {pipeline_mode = #tpu.pipeline_mode<synchronous>, transform_indices = @transform_1, window_bounds = array<i64: 256, 128>}, {pipeline_mode = #tpu.pipeline_mode<synchronous>, transform_indices = @transform_2, window_bounds = array<i64: 1, 128>}, {pipeline_mode = #tpu.pipeline_mode<synchronous>, transform_indices = @transform_3, window_bounds = array<i64: 128, 128>}, {pipeline_mode = #tpu.pipeline_mode<synchronous>, transform_indices = @transform_4, window_bounds = array<i64: 1, 128>}, {pipeline_mode = #tpu.pipeline_mode<synchronous>, transform_indices = @transform_5, window_bounds = array<i64: 128, 256>}, {pipeline_mode = #tpu.pipeline_mode<synchronous>, transform_indices = @transform_6, window_bounds = array<i64: 1, 256>}, {transform_indices = @transform_7, window_bounds = array<i64: 128, 128>}, {pipeline_mode = #tpu.pipeline_mode<synchronous>, transform_indices = @transform_8, window_bounds = array<i64: 128, 256>}, {transform_indices = @transform_9, window_bounds = array<i64: 128, 256>}]} {
    %c0 = arith.constant 0 : index
    %c0_0 = arith.constant 0 : index
    %0 = vector.load %arg1[%c0, %c0_0] : memref<128x256xbf16, #tpu.memory_space<vmem>>, vector<128x256xbf16>
    %c0_1 = arith.constant 0 : index
    %c0_2 = arith.constant 0 : index
    %1 = vector.load %arg2[%c0_1, %c0_2] : memref<256x128xbf16, #tpu.memory_space<vmem>>, vector<256x128xbf16>
    %cst = arith.constant dense<0.000000e+00> : vector<128x128xf32>
    %2 = tpu.matmul %0, %1, %cst {dimension_numbers = #tpu.dot_dimension_numbers<[1], [0], [0], [1], [0, 0, 1, 1], [], []>} : vector<128x256xbf16>, vector<256x128xbf16>, vector<128x128xf32> -> vector<128x128xf32>
    %c0_3 = arith.constant 0 : index
    %c0_4 = arith.constant 0 : index
    %3 = vector.load %arg3[%c0_3, %c0_4] : memref<1x128xf32, #tpu.memory_space<vmem>>, vector<1x128xf32>
    %4 = vector.broadcast %3 : vector<1x128xf32> to vector<128x128xf32>
    %5 = arith.addf %2, %4 : vector<128x128xf32>
    %cst_5 = arith.constant 0.000000e+00 : f32
    %6 = vector.broadcast %cst_5 : f32 to vector<128x128xf32>
    %7 = arith.maximumf %5, %6 : vector<128x128xf32>
    %8 = arith.truncf %7 : vector<128x128xf32> to vector<128x128xbf16>
    %c0_6 = arith.constant 0 : index
    %c0_7 = arith.constant 0 : index
    %9 = vector.load %arg4[%c0_6, %c0_7] : memref<128x128xbf16, #tpu.memory_space<vmem>>, vector<128x128xbf16>
    %cst_8 = arith.constant dense<0.000000e+00> : vector<128x128xf32>
    %10 = tpu.matmul %8, %9, %cst_8 {dimension_numbers = #tpu.dot_dimension_numbers<[1], [0], [0], [1], [0, 0, 1, 1], [], []>} : vector<128x128xbf16>, vector<128x128xbf16>, vector<128x128xf32> -> vector<128x128xf32>
    %c0_9 = arith.constant 0 : index
    %c0_10 = arith.constant 0 : index
    %11 = vector.load %arg5[%c0_9, %c0_10] : memref<1x128xf32, #tpu.memory_space<vmem>>, vector<1x128xf32>
    %12 = vector.broadcast %11 : vector<1x128xf32> to vector<128x128xf32>
    %13 = arith.addf %10, %12 : vector<128x128xf32>
    %cst_11 = arith.constant 0.000000e+00 : f32
    %14 = vector.broadcast %cst_11 : f32 to vector<128x128xf32>
    %15 = arith.maximumf %13, %14 : vector<128x128xf32>
    %16 = arith.truncf %15 : vector<128x128xf32> to vector<128x128xbf16>
    %c0_12 = arith.constant 0 : index
    %c0_13 = arith.constant 0 : index
    %17 = vector.load %arg6[%c0_12, %c0_13] : memref<128x256xbf16, #tpu.memory_space<vmem>>, vector<128x256xbf16>
    %cst_14 = arith.constant dense<0.000000e+00> : vector<128x256xf32>
    %18 = tpu.matmul %16, %17, %cst_14 {dimension_numbers = #tpu.dot_dimension_numbers<[1], [0], [0], [1], [0, 0, 1, 1], [], []>} : vector<128x128xbf16>, vector<128x256xbf16>, vector<128x256xf32> -> vector<128x256xf32>
    %c0_15 = arith.constant 0 : index
    %c0_16 = arith.constant 0 : index
    %19 = vector.load %arg7[%c0_15, %c0_16] : memref<1x256xf32, #tpu.memory_space<vmem>>, vector<1x256xf32>
    %20 = vector.broadcast %19 : vector<1x256xf32> to vector<128x256xf32>
    %21 = arith.addf %18, %20 : vector<128x256xf32>
    %c0_17 = arith.constant 0 : index
    %c0_18 = arith.constant 0 : index
    %22 = vector.load %arg8[%c0_17, %c0_18] : memref<128x128xbf16, #tpu.memory_space<vmem>>, vector<128x128xbf16>
    %c0_19 = arith.constant 0 : index
    %c0_20 = arith.constant 0 : index
    %23 = vector.load %arg9[%c0_19, %c0_20] : memref<128x256xbf16, #tpu.memory_space<vmem>>, vector<128x256xbf16>
    %cst_21 = arith.constant dense<0.000000e+00> : vector<128x256xf32>
    %24 = tpu.matmul %22, %23, %cst_21 {dimension_numbers = #tpu.dot_dimension_numbers<[1], [0], [0], [1], [0, 0, 1, 1], [], []>} : vector<128x128xbf16>, vector<128x256xbf16>, vector<128x256xf32> -> vector<128x256xf32>
    %25 = arith.addf %21, %24 : vector<128x256xf32>
    %c0_22 = arith.constant 0 : index
    %c0_23 = arith.constant 0 : index
    %26 = vector.load %arg10[%c0_22, %c0_23] : memref<128x256xf32, #tpu.memory_space<vmem>>, vector<128x256xf32>
    tpu.vector_store %arg10[%c0_22, %c0_23], %25 {strides = array<i32>} : memref<128x256xf32, #tpu.memory_space<vmem>>, vector<128x256xf32>,
    return
  }
  func.func @transform_0(%arg0: i32) -> (i32, i32) {
    %c0_i32 = arith.constant 0 : i32
    %c0_i32_0 = arith.constant 0 : i32
    return %arg0, %c0_i32 : i32, i32
  }
  func.func @transform_1(%arg0: i32) -> (i32, i32) {
    %c0_i32 = arith.constant 0 : i32
    %c0_i32_0 = arith.constant 0 : i32
    %c0_i32_1 = arith.constant 0 : i32
    return %c0_i32, %c0_i32_0 : i32, i32
  }
  func.func @transform_2(%arg0: i32) -> (i32, i32) {
    %c0_i32 = arith.constant 0 : i32
    %c0_i32_0 = arith.constant 0 : i32
    %c0_i32_1 = arith.constant 0 : i32
    return %c0_i32, %c0_i32_0 : i32, i32
  }
  func.func @transform_3(%arg0: i32) -> (i32, i32) {
    %c0_i32 = arith.constant 0 : i32
    %c0_i32_0 = arith.constant 0 : i32
    %c0_i32_1 = arith.constant 0 : i32
    return %c0_i32, %c0_i32_0 : i32, i32
  }
  func.func @transform_4(%arg0: i32) -> (i32, i32) {
    %c0_i32 = arith.constant 0 : i32
    %c0_i32_0 = arith.constant 0 : i32
    %c0_i32_1 = arith.constant 0 : i32
    return %c0_i32, %c0_i32_0 : i32, i32
  }
  func.func @transform_5(%arg0: i32) -> (i32, i32) {
    %c0_i32 = arith.constant 0 : i32
    %c0_i32_0 = arith.constant 0 : i32
    %c0_i32_1 = arith.constant 0 : i32
    return %c0_i32, %c0_i32_0 : i32, i32
  }
  func.func @transform_6(%arg0: i32) -> (i32, i32) {
    %c0_i32 = arith.constant 0 : i32
    %c0_i32_0 = arith.constant 0 : i32
    %c0_i32_1 = arith.constant 0 : i32
    return %c0_i32, %c0_i32_0 : i32, i32
  }
  func.func @transform_7(%arg0: i32) -> (i32, i32) {
    %c0_i32 = arith.constant 0 : i32
    %c0_i32_0 = arith.constant 0 : i32
    return %arg0, %c0_i32 : i32, i32
  }
  func.func @transform_8(%arg0: i32) -> (i32, i32) {
    %c0_i32 = arith.constant 0 : i32
    %c0_i32_0 = arith.constant 0 : i32
    %c0_i32_1 = arith.constant 0 : i32
    return %c0_i32, %c0_i32_0 : i32, i32
  }
  func.func @transform_9(%arg0: i32) -> (i32, i32) {
    %c0_i32 = arith.constant 0 : i32
    %c0_i32_0 = arith.constant 0 : i32
    return %arg0, %c0_i32 : i32, i32
  }
}

</mosaic_0001>

<llo_original>
// kernel: tpu_custom_call.1
$region0: #{tpu_custom_call.1}
  #allocation0 [shape = 'u32[]', space=smem, size = 0x4, offset = 0x4, fixed_abs, tag = 'smem constant byte address 0x4 - core index']
  #allocation1 [shape = 'u32[144,128]{1,0:T(1,128)}', space=vmem, size = 0x12000, scoped, tag = 'internal scratch']
  %s0 = inlined_call_operand.hbm [shape: bf16[256,256], index: 0, kind: input, shape index: {}]
  %s1 = inlined_call_operand.hbm [shape: bf16[256,128], index: 1, kind: input, shape index: {}]
  %s2 = inlined_call_operand.vmem [shape: f32[1,128], index: 2, kind: input, shape index: {}]
  %s3 = inlined_call_operand.hbm [shape: bf16[128,128], index: 3, kind: input, shape index: {}]
  %s4 = inlined_call_operand.vmem [shape: f32[1,128], index: 4, kind: input, shape index: {}]
  %s5 = inlined_call_operand.hbm [shape: bf16[128,256], index: 5, kind: input, shape index: {}]
  %s6 = inlined_call_operand.vmem [shape: f32[1,256], index: 6, kind: input, shape index: {}]
  %s7 = inlined_call_operand.hbm [shape: bf16[256,128], index: 7, kind: input, shape index: {}]
  %s8 = inlined_call_operand.hbm [shape: bf16[128,256], index: 8, kind: input, shape index: {}]
  %s9 = inlined_call_operand.hbm [shape: f32[256,256], index: 9, kind: output, shape index: {}]
  %s10 = sld [smem:[#allocation0]]
  $region93: #{tpu_custom_call.1} parent=0
    _
  %s12 = ssub.s32 1, %s10
  %s13 = scalar_select 0, %s12, %s10
  $region1: #{tpu_custom_call.1} parent=0
    #allocation2 [shape = 'u8[131072]{0}', space=vmem, size = 0x20000, scoped, tag = 'input window, operand 0']
    #allocation3 [shape = 's32[2]{0}', space=sflag, size = 0x8, scoped, tag = 'scoped memory for tpu_custom_call.1']
    #allocation4 [shape = 's32[2]{0}', space=sflag, size = 0x8, scoped, tag = 'scoped memory for tpu_custom_call.1']
    #allocation5 [shape = 'u8[65536]{0}', space=vmem, size = 0x10000, scoped, tag = 'input window, operand 1, single buffered']
    #allocation6 [shape = 's32[1]{0}', space=sflag, size = 0x4, scoped, tag = 'scoped memory for tpu_custom_call.1']
    #allocation7 [shape = 'u8[32768]{0}', space=vmem, size = 0x8000, scoped, tag = 'input window, operand 3, single buffered']
    #allocation8 [shape = 'u8[65536]{0}', space=vmem, size = 0x10000, scoped, tag = 'input window, operand 5, single buffered']
    #allocation9 [shape = 's32[1]{0}', space=sflag, size = 0x4, scoped, tag = 'scoped memory for tpu_custom_call.1']
    #allocation10 [shape = 'u8[65536]{0}', space=vmem, size = 0x10000, scoped, tag = 'input window, operand 7']
    #allocation11 [shape = 'u8[65536]{0}', space=vmem, size = 0x10000, scoped, tag = 'input window, operand 8, single buffered']
    #allocation12 [shape = 'u8[262144]{0}', space=vmem, size = 0x40000, scoped, tag = 'output window, operand 0']
    %14 = vsyncpa [#allocation3], 0
    %s15 = scalar_lea.sflag [#allocation3], 1
    %16 = vsyncpa %s15, 0
    %17 = vsyncpa [#allocation6], 0
    %18 = vsyncpa [#allocation9], 0
    %19 = vsyncpa [#allocation4], 0
    %s20 = scalar_lea.sflag [#allocation4], 1
    %21 = vsyncpa %s20, 0
    loop: start=0, step=1, limit=4
    $region2: #{tpu_custom_call.1} parent=1 // loop_pre_header
      _
    $region3: #{tpu_custom_call.1} parent=1 // loop_header
      %s23 = sphi 0, %s27
      %p24 = scmp.ge.s32.totalorder %s23, 4
      %s33 = sphi 0, %s35
      %s36 = sphi 0, %s33
      %s37 = sphi 0, %s36
      %s53 = sphi 0, %s37
      %s57 = sphi 0, %s57
      %s59 = sphi 0, %s57
      %s60 = sphi 0, %s59
      %s74 = sphi 0, %s60
      %s78 = sphi 0, %s78
      %s80 = sphi 0, %s78
      %s81 = sphi 0, %s80
      %s95 = sphi 0, %s81
      %s99 = sphi 0, %s99
      %s101 = sphi 0, %s99
      %s102 = sphi 0, %s101
      %s116 = sphi 0, %s102
      %s120 = sphi 0, %s120
      %s122 = sphi 0, %s120
      %s123 = sphi 0, %s122
      %s137 = sphi 0, %s123
      %s141 = sphi 0, %s141
      %s143 = sphi 0, %s141
      %s144 = sphi 0, %s143
      %s158 = sphi 0, %s144
      %s162 = sphi 0, %s162
      %s164 = sphi 0, %s162
      %s165 = sphi 0, %s164
      %s179 = sphi 0, %s165
      %s185 = sphi 0, %s187
      %s188 = sphi 0, %s185
      %s189 = sphi 0, %s188
      %s205 = sphi 0, %s189
      %s209 = sphi 0, %s209
      %s211 = sphi 0, %s209
      %s212 = sphi 0, %s211
      %s226 = sphi 0, %s212
      %s232 = sphi 0, %s234
      %s235 = sphi 0, %s232
      %s236 = sphi 0, %s235
      %s252 = sphi 0, %s236
    $region4: #{tpu_custom_call.1} parent=1 // loop_header_branch
      %26 = sbr.rel (%p24) target = $region8
    $region5: #{tpu_custom_call.1} parent=1 // loop_body
      %s28 = ssub.s32 %s23, 1
      %s29 = ssub.s32 %s23, 2
      %s30 = sadd.s32 %s23, 1
      %s31 = ssub.s32 %s23, %s30
      %p32 = scmp.eq.s32.totalorder %s31, 0
      %s34 = sadd.s32 %s33, 1
      %s35 = scalar_select %p32, %s33, %s34
      %p38 = pneg %p32
      %p39 = scmp.eq.s32.totalorder %s23, 1
      %p40 = por %p38, %p39
      %p41 = scmp.ne.s32.totalorder %s33, %s36
      %p42 = scmp.eq.s32.totalorder %s23, 0
      %p43 = por %p41, %p42
      %p44 = scmp.ne.s32.totalorder %s33, %s36
      %p45 = scmp.eq.s32.totalorder %s28, 1
      %p46 = por %p44, %p45
      %p47 = scmp.ne.s32.totalorder %s36, %s37
      %p48 = scmp.eq.s32.totalorder %s28, 0
      %p49 = por %p47, %p48
      %p50 = scmp.ne.s32.totalorder %s36, %s37
      %p51 = scmp.eq.s32.totalorder %s29, 1
      %p52 = por %p50, %p51
      %p54 = scmp.ne.s32.totalorder %s37, %s53
      %p55 = scmp.eq.s32.totalorder %s29, 0
      %p56 = por %p54, %p55
      %s58 = sadd.s32 %s57, 1
      %p61 = scmp.eq.s32.totalorder %s23, 1
      %p62 = scmp.ne.s32.totalorder %s57, %s59
      %p63 = scmp.eq.s32.totalorder %s23, 0
      %p64 = por %p62, %p63
      %p65 = scmp.ne.s32.totalorder %s57, %s59
      %p66 = scmp.eq.s32.totalorder %s28, 1
      %p67 = por %p65, %p66
      %p68 = scmp.ne.s32.totalorder %s59, %s60
      %p69 = scmp.eq.s32.totalorder %s28, 0
      %p70 = por %p68, %p69
      %p71 = scmp.ne.s32.totalorder %s59, %s60
      %p72 = scmp.eq.s32.totalorder %s29, 1
      %p73 = por %p71, %p72
      %p75 = scmp.ne.s32.totalorder %s60, %s74
      %p76 = scmp.eq.s32.totalorder %s29, 0
      %p77 = por %p75, %p76
      %s79 = sadd.s32 %s78, 1
      %p82 = scmp.eq.s32.totalorder %s23, 1
      %p83 = scmp.ne.s32.totalorder %s78, %s80
      %p84 = scmp.eq.s32.totalorder %s23, 0
      %p85 = por %p83, %p84
      %p86 = scmp.ne.s32.totalorder %s78, %s80
      %p87 = scmp.eq.s32.totalorder %s28, 1
      %p88 = por %p86, %p87
      %p89 = scmp.ne.s32.totalorder %s80, %s81
      %p90 = scmp.eq.s32.totalorder %s28, 0
      %p91 = por %p89, %p90
      %p92 = scmp.ne.s32.totalorder %s80, %s81
      %p93 = scmp.eq.s32.totalorder %s29, 1
      %p94 = por %p92, %p93
      %p96 = scmp.ne.s32.totalorder %s81, %s95
      %p97 = scmp.eq.s32.totalorder %s29, 0
      %p98 = por %p96, %p97
      %s100 = sadd.s32 %s99, 1
      %p103 = scmp.eq.s32.totalorder %s23, 1
      %p104 = scmp.ne.s32.totalorder %s99, %s101
      %p105 = scmp.eq.s32.totalorder %s23, 0
      %p106 = por %p104, %p105
      %p107 = scmp.ne.s32.totalorder %s99, %s101
      %p108 = scmp.eq.s32.totalorder %s28, 1
      %p109 = por %p107, %p108
      %p110 = scmp.ne.s32.totalorder %s101, %s102
      %p111 = scmp.eq.s32.totalorder %s28, 0
      %p112 = por %p110, %p111
      %p113 = scmp.ne.s32.totalorder %s101, %s102
      %p114 = scmp.eq.s32.totalorder %s29, 1
      %p115 = por %p113, %p114
      %p117 = scmp.ne.s32.totalorder %s102, %s116
      %p118 = scmp.eq.s32.totalorder %s29, 0
      %p119 = por %p117, %p118
      %s121 = sadd.s32 %s120, 1
      %p124 = scmp.eq.s32.totalorder %s23, 1
      %p125 = scmp.ne.s32.totalorder %s120, %s122
      %p126 = scmp.eq.s32.totalorder %s23, 0
      %p127 = por %p125, %p126
      %p128 = scmp.ne.s32.totalorder %s120, %s122
      %p129 = scmp.eq.s32.totalorder %s28, 1
      %p130 = por %p128, %p129
      %p131 = scmp.ne.s32.totalorder %s122, %s123
      %p132 = scmp.eq.s32.totalorder %s28, 0
      %p133 = por %p131, %p132
      %p134 = scmp.ne.s32.totalorder %s122, %s123
      %p135 = scmp.eq.s32.totalorder %s29, 1
      %p136 = por %p134, %p135
      %p138 = scmp.ne.s32.totalorder %s123, %s137
      %p139 = scmp.eq.s32.totalorder %s29, 0
      %p140 = por %p138, %p139
      %s142 = sadd.s32 %s141, 1
      %p145 = scmp.eq.s32.totalorder %s23, 1
      %p146 = scmp.ne.s32.totalorder %s141, %s143
      %p147 = scmp.eq.s32.totalorder %s23, 0
      %p148 = por %p146, %p147
      %p149 = scmp.ne.s32.totalorder %s141, %s143
      %p150 = scmp.eq.s32.totalorder %s28, 1
      %p151 = por %p149, %p150
      %p152 = scmp.ne.s32.totalorder %s143, %s144
      %p153 = scmp.eq.s32.totalorder %s28, 0
      %p154 = por %p152, %p153
      %p155 = scmp.ne.s32.totalorder %s143, %s144
      %p156 = scmp.eq.s32.totalorder %s29, 1
      %p157 = por %p155, %p156
      %p159 = scmp.ne.s32.totalorder %s144, %s158
      %p160 = scmp.eq.s32.totalorder %s29, 0
      %p161 = por %p159, %p160
      %s163 = sadd.s32 %s162, 1
      %p166 = scmp.eq.s32.totalorder %s23, 1
      %p167 = scmp.ne.s32.totalorder %s162, %s164
      %p168 = scmp.eq.s32.totalorder %s23, 0
      %p169 = por %p167, %p168
      %p170 = scmp.ne.s32.totalorder %s162, %s164
      %p171 = scmp.eq.s32.totalorder %s28, 1
      %p172 = por %p170, %p171
      %p173 = scmp.ne.s32.totalorder %s164, %s165
      %p174 = scmp.eq.s32.totalorder %s28, 0
      %p175 = por %p173, %p174
      %p176 = scmp.ne.s32.totalorder %s164, %s165
      %p177 = scmp.eq.s32.totalorder %s29, 1
      %p178 = por %p176, %p177
      %p180 = scmp.ne.s32.totalorder %s165, %s179
      %p181 = scmp.eq.s32.totalorder %s29, 0
      %p182 = por %p180, %p181
      %s183 = ssub.s32 %s23, %s30
      %p184 = scmp.eq.s32.totalorder %s183, 0
      %s186 = sadd.s32 %s185, 1
      %s187 = scalar_select %p184, %s185, %s186
      %p190 = pneg %p184
      %p191 = scmp.eq.s32.totalorder %s23, 1
      %p192 = por %p190, %p191
      %p193 = scmp.ne.s32.totalorder %s185, %s188
      %p194 = scmp.eq.s32.totalorder %s23, 0
      %p195 = por %p193, %p194
      %p196 = scmp.ne.s32.totalorder %s185, %s188
      %p197 = scmp.eq.s32.totalorder %s28, 1
      %p198 = por %p196, %p197
      %p199 = scmp.ne.s32.totalorder %s188, %s189
      %p200 = scmp.eq.s32.totalorder %s28, 0
      %p201 = por %p199, %p200
      %p202 = scmp.ne.s32.totalorder %s188, %s189
      %p203 = scmp.eq.s32.totalorder %s29, 1
      %p204 = por %p202, %p203
      %p206 = scmp.ne.s32.totalorder %s189, %s205
      %p207 = scmp.eq.s32.totalorder %s29, 0
      %p208 = por %p206, %p207
      %s210 = sadd.s32 %s209, 1
      %p213 = scmp.eq.s32.totalorder %s23, 1
      %p214 = scmp.ne.s32.totalorder %s209, %s211
      %p215 = scmp.eq.s32.totalorder %s23, 0
      %p216 = por %p214, %p215
      %p217 = scmp.ne.s32.totalorder %s209, %s211
      %p218 = scmp.eq.s32.totalorder %s28, 1
      %p219 = por %p217, %p218
      %p220 = scmp.ne.s32.totalorder %s211, %s212
      %p221 = scmp.eq.s32.totalorder %s28, 0
      %p222 = por %p220, %p221
      %p223 = scmp.ne.s32.totalorder %s211, %s212
      %p224 = scmp.eq.s32.totalorder %s29, 1
      %p225 = por %p223, %p224
      %p227 = scmp.ne.s32.totalorder %s212, %s226
      %p228 = scmp.eq.s32.totalorder %s29, 0
      %p229 = por %p227, %p228
      %s230 = ssub.s32 %s23, %s30
      %p231 = scmp.eq.s32.totalorder %s230, 0
      %s233 = sadd.s32 %s232, 1
      %s234 = scalar_select %p231, %s232, %s233
      %p237 = pneg %p231
      %p238 = scmp.eq.s32.totalorder %s23, 1
      %p239 = por %p237, %p238
      %p240 = scmp.ne.s32.totalorder %s232, %s235
      %p241 = scmp.eq.s32.totalorder %s23, 0
      %p242 = por %p240, %p241
      %p243 = scmp.ne.s32.totalorder %s232, %s235
      %p244 = scmp.eq.s32.totalorder %s28, 1
      %p245 = por %p243, %p244
      %p246 = scmp.ne.s32.totalorder %s235, %s236
      %p247 = scmp.eq.s32.totalorder %s28, 0
      %p248 = por %p246, %p247
      %p249 = scmp.ne.s32.totalorder %s235, %s236
      %p250 = scmp.eq.s32.totalorder %s29, 1
      %p251 = por %p249, %p250
      %p253 = scmp.ne.s32.totalorder %s236, %s252
      %p254 = scmp.eq.s32.totalorder %s29, 0
      %p255 = por %p253, %p254
      %p256 = scmp.le.s32.totalorder 1, %s23
      %p257 = scmp.lt.s32.totalorder %s23, 3
      %p258 = pnand %p256, %p257
      %p259 = pneg %p258
      // Predicated region
      $region9: #{tpu_custom_call.1} parent=5 // pred_check
        _
      $region10: #{tpu_custom_call.1} parent=5 // pred_check_branch
        %261 = sbr.rel (%p258) target = $region12
      $region11: #{tpu_custom_call.1} parent=5 // pred_region
        %s262 = ssub.s32 %s23, 1
        // Predicated region
        $region13: #{tpu_custom_call.1} parent=11 // pred_check
          %p263 = pneg %p70
        $region14: #{tpu_custom_call.1} parent=11 // pred_check_branch
          %265 = sbr.rel (%p263) target = $region16
        $region15: #{tpu_custom_call.1} parent=11 // pred_region
          %s267 = ssub.s32 2048, 2048
          %268 = vsyncadd [#allocation6], %s267
          %s269 = sshll.u32 [#allocation5], 4
          %s270 = int_to_ptr.vmem [resolvable:$true] %s269
          %275 = dma.hbm_to_vmem [thread:$0]  %s1, 2048, %s270, [#allocation6], 64, 64, 4
        $region16: #{tpu_custom_call.1} parent=11 // pred_fallthru
          _
        // Predicated region
        $region17: #{tpu_custom_call.1} parent=11 // pred_check
          %p276 = pneg %p91
        $region18: #{tpu_custom_call.1} parent=11 // pred_check_branch
          %278 = sbr.rel (%p276) target = $region20
        $region19: #{tpu_custom_call.1} parent=11 // pred_region
          _
        $region20: #{tpu_custom_call.1} parent=11 // pred_fallthru
          _
        // Predicated region
        $region21: #{tpu_custom_call.1} parent=11 // pred_check
          %p279 = pneg %p112
        $region22: #{tpu_custom_call.1} parent=11 // pred_check_branch
          %281 = sbr.rel (%p279) target = $region24
        $region23: #{tpu_custom_call.1} parent=11 // pred_region
          %s283 = ssub.s32 1024, 1024
          %284 = vsyncadd [#allocation6], %s283
          %s285 = sshll.u32 [#allocation7], 4
          %s286 = int_to_ptr.vmem [resolvable:$true] %s285
          %291 = dma.hbm_to_vmem [thread:$0]  %s3, 1024, %s286, [#allocation6], 64, 64, 4
        $region24: #{tpu_custom_call.1} parent=11 // pred_fallthru
          _
        // Predicated region
        $region25: #{tpu_custom_call.1} parent=11 // pred_check
          %p292 = pneg %p133
        $region26: #{tpu_custom_call.1} parent=11 // pred_check_branch
          %294 = sbr.rel (%p292) target = $region28
        $region27: #{tpu_custom_call.1} parent=11 // pred_region
          _
        $region28: #{tpu_custom_call.1} parent=11 // pred_fallthru
          _
        // Predicated region
        $region29: #{tpu_custom_call.1} parent=11 // pred_check
          %p295 = pneg %p154
        $region30: #{tpu_custom_call.1} parent=11 // pred_check_branch
          %297 = sbr.rel (%p295) target = $region32
        $region31: #{tpu_custom_call.1} parent=11 // pred_region
          %s299 = ssub.s32 2048, 2048
          %300 = vsyncadd [#allocation9], %s299
          %s301 = sshll.u32 [#allocation8], 4
          %s302 = int_to_ptr.vmem [resolvable:$true] %s301
          %307 = dma.hbm_to_vmem [thread:$0]  %s5, 2048, %s302, [#allocation9], 128, 128, 8
        $region32: #{tpu_custom_call.1} parent=11 // pred_fallthru
          _
        // Predicated region
        $region33: #{tpu_custom_call.1} parent=11 // pred_check
          %p308 = pneg %p175
        $region34: #{tpu_custom_call.1} parent=11 // pred_check_branch
          %310 = sbr.rel (%p308) target = $region36
        $region35: #{tpu_custom_call.1} parent=11 // pred_region
          _
        $region36: #{tpu_custom_call.1} parent=11 // pred_fallthru
          _
        // Predicated region
        $region37: #{tpu_custom_call.1} parent=11 // pred_check
          %p311 = pneg %p222
        $region38: #{tpu_custom_call.1} parent=11 // pred_check_branch
          %313 = sbr.rel (%p311) target = $region40
        $region39: #{tpu_custom_call.1} parent=11 // pred_region
          %s315 = ssub.s32 2048, 2048
          %316 = vsyncadd [#allocation6], %s315
          %s317 = sshll.u32 [#allocation11], 4
          %s318 = int_to_ptr.vmem [resolvable:$true] %s317
          %323 = dma.hbm_to_vmem [thread:$0]  %s8, 2048, %s318, [#allocation6], 128, 128, 8
        $region40: #{tpu_custom_call.1} parent=11 // pred_fallthru
          _
      $region12: #{tpu_custom_call.1} parent=5 // pred_fallthru
        _
      %p324 = scmp.lt.s32.totalorder %s23, 2
      // Predicated region
      $region41: #{tpu_custom_call.1} parent=5 // pred_check
        %p325 = pneg %p324
      $region42: #{tpu_custom_call.1} parent=5 // pred_check_branch
        %327 = sbr.rel (%p325) target = $region44
      $region43: #{tpu_custom_call.1} parent=5 // pred_region
        // Predicated region
        $region45: #{tpu_custom_call.1} parent=43 // pred_check
          %p328 = pneg %p43
        $region46: #{tpu_custom_call.1} parent=43 // pred_check_branch
          %330 = sbr.rel (%p328) target = $region48
        $region47: #{tpu_custom_call.1} parent=43 // pred_region
          %s331 = sand.u32 %s23, 1
          %s332 = scalar_lea.sflag [#allocation3], %s331
          %s333 = sand.u32 %s33, 1
          %s334 = smul.addr %s333, 128
          %s335 = scalar_lea.vmem [#allocation2], %s334
          %s336 = smul.u32 16, %s23
          %s338 = ssub.s32 2048, 2048
          %339 = vsyncadd %s332, %s338
          %s340 = smul.addr %s336, 2
          %s341 = smul.addr %s340, 64
          %s342 = scalar_lea.hbm %s0, %s341
          %s343 = sshll.u32 %s335, 4
          %s344 = int_to_ptr.vmem [resolvable:$true] %s343
          %349 = dma.hbm_to_vmem [thread:$0]  %s342, 2048, %s344, %s332, 128, 128, 8
        $region48: #{tpu_custom_call.1} parent=43 // pred_fallthru
          _
        // Predicated region
        $region49: #{tpu_custom_call.1} parent=43 // pred_check
          %p350 = pneg %p195
        $region50: #{tpu_custom_call.1} parent=43 // pred_check_branch
          %352 = sbr.rel (%p350) target = $region52
        $region51: #{tpu_custom_call.1} parent=43 // pred_region
          %s353 = sand.u32 %s23, 1
          %s354 = scalar_lea.sflag [#allocation3], %s353
          %s355 = sand.u32 %s185, 1
          %s356 = smul.addr %s355, 64
          %s357 = scalar_lea.vmem [#allocation10], %s356
          %s358 = smul.u32 16, %s23
          %s360 = ssub.s32 1024, 1024
          %361 = vsyncadd %s354, %s360
          %s362 = smul.addr %s358, 64
          %s363 = scalar_lea.hbm %s7, %s362
          %s364 = sshll.u32 %s357, 4
          %s365 = int_to_ptr.vmem [resolvable:$true] %s364
          %370 = dma.hbm_to_vmem [thread:$0]  %s363, 1024, %s365, %s354, 64, 64, 4
        $region52: #{tpu_custom_call.1} parent=43 // pred_fallthru
          _
      $region44: #{tpu_custom_call.1} parent=5 // pred_fallthru
        _
      %p371 = scmp.le.s32.totalorder 1, %s23
      %p372 = scmp.lt.s32.totalorder %s23, 3
      %p373 = pnand %p371, %p372
      %p374 = pneg %p373
      // Predicated region
      $region53: #{tpu_custom_call.1} parent=5 // pred_check
        _
      $region54: #{tpu_custom_call.1} parent=5 // pred_check_branch
        %376 = sbr.rel (%p373) target = $region56
      $region55: #{tpu_custom_call.1} parent=5 // pred_region
        %s377 = ssub.s32 %s23, 1
        %s378 = sand.u32 %s28, 1
        %s379 = scalar_lea.sflag [#allocation3], %s378
        %s380 = sand.u32 %s36, 1
        %s381 = smul.addr %s380, 128
        %s382 = scalar_lea.vmem [#allocation2], %s381
        // Predicated region
        $region57: #{tpu_custom_call.1} parent=55 // pred_check
          %p383 = pneg %p49
        $region58: #{tpu_custom_call.1} parent=55 // pred_check_branch
          %385 = sbr.rel (%p383) target = $region60
        $region59: #{tpu_custom_call.1} parent=55 // pred_region
          %386 = dma.done %s379, 2048
        $region60: #{tpu_custom_call.1} parent=55 // pred_fallthru
          _
        // Predicated region
        $region61: #{tpu_custom_call.1} parent=55 // pred_check
          %p387 = pneg %p70
        $region62: #{tpu_custom_call.1} parent=55 // pred_check_branch
          %389 = sbr.rel (%p387) target = $region64
        $region63: #{tpu_custom_call.1} parent=55 // pred_region
          %390 = dma.done [#allocation6], 2048
        $region64: #{tpu_custom_call.1} parent=55 // pred_fallthru
          _
        // Predicated region
        $region65: #{tpu_custom_call.1} parent=55 // pred_check
          %p391 = pneg %p112
        $region66: #{tpu_custom_call.1} parent=55 // pred_check_branch
          %393 = sbr.rel (%p391) target = $region68
        $region67: #{tpu_custom_call.1} parent=55 // pred_region
          %394 = dma.done [#allocation6], 1024
        $region68: #{tpu_custom_call.1} parent=55 // pred_fallthru
          _
        // Predicated region
        $region69: #{tpu_custom_call.1} parent=55 // pred_check
          %p395 = pneg %p154
        $region70: #{tpu_custom_call.1} parent=55 // pred_check_branch
          %397 = sbr.rel (%p395) target = $region72
        $region71: #{tpu_custom_call.1} parent=55 // pred_region
          %398 = dma.done [#allocation9], 2048
        $region72: #{tpu_custom_call.1} parent=55 // pred_fallthru
          _
        %s399 = sand.u32 %s28, 1
        %s400 = scalar_lea.sflag [#allocation3], %s399
        %s401 = sand.u32 %s188, 1
        %s402 = smul.addr %s401, 64
        %s403 = scalar_lea.vmem [#allocation10], %s402
        // Predicated region
        $region73: #{tpu_custom_call.1} parent=55 // pred_check
          %p404 = pneg %p201
        $region74: #{tpu_custom_call.1} parent=55 // pred_check_branch
          %406 = sbr.rel (%p404) target = $region76
        $region75: #{tpu_custom_call.1} parent=55 // pred_region
          %407 = dma.done %s400, 1024
        $region76: #{tpu_custom_call.1} parent=55 // pred_fallthru
          _
        // Predicated region
        $region77: #{tpu_custom_call.1} parent=55 // pred_check
          %p408 = pneg %p222
        $region78: #{tpu_custom_call.1} parent=55 // pred_check_branch
          %410 = sbr.rel (%p408) target = $region80
        $region79: #{tpu_custom_call.1} parent=55 // pred_region
          %411 = dma.done [#allocation6], 2048
        $region80: #{tpu_custom_call.1} parent=55 // pred_fallthru
          _
        %s412 = sand.u32 %s28, 1
        %s413 = scalar_lea.sflag [#allocation3], %s412
        %s414 = sand.u32 %s36, 1
        %s415 = smul.addr %s414, 128
        %s416 = scalar_lea.vmem [#allocation2], %s415
        %p417 = pneg %p49
        %p418 = pneg %p46
        %p419 = pneg %p70
        %p420 = pneg %p67
        %p421 = pneg %p91
        %p422 = pneg %p88
        %p423 = pneg %p112
        %p424 = pneg %p109
        %p425 = pneg %p133
        %p426 = pneg %p130
        %p427 = pneg %p154
        %p428 = pneg %p151
        %p429 = pneg %p175
        %p430 = pneg %p172
        %s431 = sand.u32 %s28, 1
        %s432 = scalar_lea.sflag [#allocation3], %s431
        %s433 = sand.u32 %s188, 1
        %s434 = smul.addr %s433, 64
        %s435 = scalar_lea.vmem [#allocation10], %s434
        %p436 = pneg %p201
        %p437 = pneg %p198
        %p438 = pneg %p222
        %p439 = pneg %p219
        %p440 = pneg %p248
        %p441 = pneg %p245
        %s442 = sand.u32 %s235, 1
        %s443 = scalar_lea.sflag [#allocation4], %s442
        %s444 = sand.u32 %s235, 1
        %s445 = smul.addr %s444, 256
        %s446 = scalar_lea.vmem [#allocation12], %s445
        %s447 = smul.u32 16, %s28
        %s448 = smul.u32 16, %s28
        %s449 = smul.u32 16, %s28
        %v451 = vld [vmem:[%s382] sm:$0xff]
        %v452 = vld [vmem:[%s382 + $0x8] sm:$0xff]
        %v453 = vld [vmem:[%s382 + $0x10] sm:$0xff]
        %v454 = vld [vmem:[%s382 + $0x18] sm:$0xff]
        %v455 = vld [vmem:[%s382 + $0x20] sm:$0xff]
        %v456 = vld [vmem:[%s382 + $0x28] sm:$0xff]
        %v457 = vld [vmem:[%s382 + $0x30] sm:$0xff]
        %v458 = vld [vmem:[%s382 + $0x38] sm:$0xff]
        %v459 = vld [vmem:[%s382 + $0x40] sm:$0xff]
        %v460 = vld [vmem:[%s382 + $0x48] sm:$0xff]
        %v461 = vld [vmem:[%s382 + $0x50] sm:$0xff]
        %v462 = vld [vmem:[%s382 + $0x58] sm:$0xff]
        %v463 = vld [vmem:[%s382 + $0x60] sm:$0xff]
        %v464 = vld [vmem:[%s382 + $0x68] sm:$0xff]
        %v465 = vld [vmem:[%s382 + $0x70] sm:$0xff]
        %v466 = vld [vmem:[%s382 + $0x78] sm:$0xff]
        %v467 = vld [vmem:[#allocation5] sm:$0xf]
        %v468 = vld [vmem:[#allocation5 + $0x4] sm:$0xf]
        %v469 = vld [vmem:[#allocation5 + $0x8] sm:$0xf]
        %v470 = vld [vmem:[#allocation5 + $0xc] sm:$0xf]
        %v471 = vld [vmem:[#allocation5 + $0x10] sm:$0xf]
        %v472 = vld [vmem:[#allocation5 + $0x14] sm:$0xf]
        %v473 = vld [vmem:[#allocation5 + $0x18] sm:$0xf]
        %v474 = vld [vmem:[#allocation5 + $0x1c] sm:$0xf]
        %v475 = vld [vmem:[#allocation5 + $0x20] sm:$0xf]
        %v476 = vld [vmem:[#allocation5 + $0x24] sm:$0xf]
        %v477 = vld [vmem:[#allocation5 + $0x28] sm:$0xf]
        %v478 = vld [vmem:[#allocation5 + $0x2c] sm:$0xf]
        %v479 = vld [vmem:[#allocation5 + $0x30] sm:$0xf]
        %v480 = vld [vmem:[#allocation5 + $0x34] sm:$0xf]
        %v481 = vld [vmem:[#allocation5 + $0x38] sm:$0xf]
        %v482 = vld [vmem:[#allocation5 + $0x3c] sm:$0xf]
        %v483 = vld [vmem:[#allocation5 + $0x40] sm:$0xf]
        %v484 = vld [vmem:[#allocation5 + $0x44] sm:$0xf]
        %v485 = vld [vmem:[#allocation5 + $0x48] sm:$0xf]
        %v486 = vld [vmem:[#allocation5 + $0x4c] sm:$0xf]
        %v487 = vld [vmem:[#allocation5 + $0x50] sm:$0xf]
        %v488 = vld [vmem:[#allocation5 + $0x54] sm:$0xf]
        %v489 = vld [vmem:[#allocation5 + $0x58] sm:$0xf]
        %v490 = vld [vmem:[#allocation5 + $0x5c] sm:$0xf]
        %v491 = vld [vmem:[#allocation5 + $0x60] sm:$0xf]
        %v492 = vld [vmem:[#allocation5 + $0x64] sm:$0xf]
        %v493 = vld [vmem:[#allocation5 + $0x68] sm:$0xf]
        %v494 = vld [vmem:[#allocation5 + $0x6c] sm:$0xf]
        %v495 = vld [vmem:[#allocation5 + $0x70] sm:$0xf]
        %v496 = vld [vmem:[#allocation5 + $0x74] sm:$0xf]
        %v497 = vld [vmem:[#allocation5 + $0x78] sm:$0xf]
        %v498 = vld [vmem:[#allocation5 + $0x7c] sm:$0xf]
        %v499 = vld [vmem:[%s2] sm:$0x1]
        %v501 = vlaneseq
        %v502 = vshrl.u32 %v501, 7
        %v503 = vsub.s32 0, %v502
        %v504 = vrot.slane %v499, %v503
        %v522 = vunpack.c.l.b16 %v451
        %v523 = vunpack.c.h.b16 %v451
        %v524 = vunpack.c.l.b16 %v452
        %v525 = vunpack.c.h.b16 %v452
        %v526 = vunpack.c.l.b16 %v453
        %v527 = vunpack.c.h.b16 %v453
        %v528 = vunpack.c.l.b16 %v454
        %v529 = vunpack.c.h.b16 %v454
        %v530 = vunpack.c.l.b16 %v455
        %v531 = vunpack.c.h.b16 %v455
        %v532 = vunpack.c.l.b16 %v456
        %v533 = vunpack.c.h.b16 %v456
        %v534 = vunpack.c.l.b16 %v457
        %v535 = vunpack.c.h.b16 %v457
        %v536 = vunpack.c.l.b16 %v458
        %v537 = vunpack.c.h.b16 %v458
        %v538 = vunpack.c.l.b16 %v459
        %v539 = vunpack.c.h.b16 %v459
        %v540 = vunpack.c.l.b16 %v460
        %v541 = vunpack.c.h.b16 %v460
        %v542 = vunpack.c.l.b16 %v461
        %v543 = vunpack.c.h.b16 %v461
        %v544 = vunpack.c.l.b16 %v462
        %v545 = vunpack.c.h.b16 %v462
        %v546 = vunpack.c.l.b16 %v463
        %v547 = vunpack.c.h.b16 %v463
        %v548 = vunpack.c.l.b16 %v464
        %v549 = vunpack.c.h.b16 %v464
        %v550 = vunpack.c.l.b16 %v465
        %v551 = vunpack.c.h.b16 %v465
        %v552 = vunpack.c.l.b16 %v466
        %v553 = vunpack.c.h.b16 %v466
        %v554 = vpack.c.b16 %v524, %v522
        %v555 = vpack.c.b16 %v525, %v523
        %v556 = vpack.c.b16 %v528, %v526
        %v557 = vpack.c.b16 %v529, %v527
        %v558 = vpack.c.b16 %v532, %v530
        %v559 = vpack.c.b16 %v533, %v531
        %v560 = vpack.c.b16 %v536, %v534
        %v561 = vpack.c.b16 %v537, %v535
        %v562 = vpack.c.b16 %v540, %v538
        %v563 = vpack.c.b16 %v541, %v539
        %v564 = vpack.c.b16 %v544, %v542
        %v565 = vpack.c.b16 %v545, %v543
        %v566 = vpack.c.b16 %v548, %v546
        %v567 = vpack.c.b16 %v549, %v547
        %v568 = vpack.c.b16 %v552, %v550
        %v569 = vpack.c.b16 %v553, %v551
        %v618 = vunpack.c.l.b16 %v467
        %v619 = vunpack.c.l.b16 %v468
        %v620 = vunpack.c.l.b16 %v469
        %v621 = vunpack.c.l.b16 %v470
        %v622 = vunpack.c.l.b16 %v471
        %v623 = vunpack.c.l.b16 %v472
        %v624 = vunpack.c.l.b16 %v473
        %v625 = vunpack.c.l.b16 %v474
        %v626 = vunpack.c.l.b16 %v475
        %v627 = vunpack.c.l.b16 %v476
        %v628 = vunpack.c.l.b16 %v477
        %v629 = vunpack.c.l.b16 %v478
        %v630 = vunpack.c.l.b16 %v479
        %v631 = vunpack.c.l.b16 %v480
        %v632 = vunpack.c.l.b16 %v481
        %v633 = vunpack.c.l.b16 %v482
        %v634 = vunpack.c.l.b16 %v483
        %v635 = vunpack.c.l.b16 %v484
        %v636 = vunpack.c.l.b16 %v485
        %v637 = vunpack.c.l.b16 %v486
        %v638 = vunpack.c.l.b16 %v487
        %v639 = vunpack.c.l.b16 %v488
        %v640 = vunpack.c.l.b16 %v489
        %v641 = vunpack.c.l.b16 %v490
        %v642 = vunpack.c.l.b16 %v491
        %v643 = vunpack.c.l.b16 %v492
        %v644 = vunpack.c.l.b16 %v493
        %v645 = vunpack.c.l.b16 %v494
        %v646 = vunpack.c.l.b16 %v495
        %v647 = vunpack.c.l.b16 %v496
        %v648 = vunpack.c.l.b16 %v497
        %v649 = vunpack.c.l.b16 %v498
        %v650 = vpack.c.b16 %v619, %v618
        %v651 = vpack.c.b16 %v621, %v620
        %v652 = vpack.c.b16 %v623, %v622
        %v653 = vpack.c.b16 %v625, %v624
        %v654 = vpack.c.b16 %v627, %v626
        %v655 = vpack.c.b16 %v629, %v628
        %v656 = vpack.c.b16 %v631, %v630
        %v657 = vpack.c.b16 %v633, %v632
        %v658 = vpack.c.b16 %v635, %v634
        %v659 = vpack.c.b16 %v637, %v636
        %v660 = vpack.c.b16 %v639, %v638
        %v661 = vpack.c.b16 %v641, %v640
        %v662 = vpack.c.b16 %v643, %v642
        %v663 = vpack.c.b16 %v645, %v644
        %v664 = vpack.c.b16 %v647, %v646
        %v665 = vpack.c.b16 %v649, %v648
        %682 = vmatprep.subr.bf16.mxu0 0
        %683 = vmatpush1.bf16.msra.mxu0 %v657
        %684 = vmatprep.subr.bf16.mxu0 0
        %685 = vmatpush1.bf16.msra.mxu0 %v656
        %686 = vmatprep.subr.bf16.mxu0 0
        %687 = vmatpush1.bf16.msra.mxu0 %v655
        %688 = vmatprep.subr.bf16.mxu0 0
        %689 = vmatpush1.bf16.msra.mxu0 %v654
        %690 = vmatprep.subr.bf16.mxu0 0
        %691 = vmatpush1.bf16.msra.mxu0 %v653
        %692 = vmatprep.subr.bf16.mxu0 0
        %693 = vmatpush1.bf16.msra.mxu0 %v652
        %694 = vmatprep.subr.bf16.mxu0 0
        %695 = vmatpush1.bf16.msra.mxu0 %v651
        %696 = vmatprep.subr.bf16.mxu0 0
        %697 = vmatpush1.bf16.msra.mxu0 %v650
        %698 = vmatprep.subr.bf16.mxu0 0
        %699 = vmatpush2.bf16.msra.mxu0 %v665
        %700 = vmatprep.subr.bf16.mxu0 0
        %701 = vmatpush2.bf16.msra.mxu0 %v664
        %702 = vmatprep.subr.bf16.mxu0 0
        %703 = vmatpush2.bf16.msra.mxu0 %v663
        %704 = vmatprep.subr.bf16.mxu0 0
        %705 = vmatpush2.bf16.msra.mxu0 %v662
        %706 = vmatprep.subr.bf16.mxu0 0
        %707 = vmatpush2.bf16.msra.mxu0 %v661
        %708 = vmatprep.subr.bf16.mxu0 0
        %709 = vmatpush2.bf16.msra.mxu0 %v660
        %710 = vmatprep.subr.bf16.mxu0 0
        %711 = vmatpush2.bf16.msra.mxu0 %v659
        %712 = vmatprep.subr.bf16.mxu0 0
        %713 = vmatpush2.bf16.msra.mxu0 %v658
        %714 = vmatprep.mubr.bf16.mxu0 %v555
        %715 = vmatmul.mubr.bf16.gmra.mxu0 %v554
        %v716 = vpop.f32.mrf.mxu0
        %v717 = vadd.f32 %v504, %v716
        %v718 = vpop.f32.mrf.mxu0
        %v719 = vpop.f32.mrf.mxu0
        %v720 = vadd.f32 %v504, %v719
        %v721 = vpop.f32.mrf.mxu0
        %722 = vmatprep.mubr.bf16.mxu0 %v557
        %723 = vmatmul.mubr.bf16.gmra.mxu0 %v556
        %v724 = vpop.f32.mrf.mxu0
        %v725 = vadd.f32 %v504, %v724
        %v726 = vpop.f32.mrf.mxu0
        %v727 = vpop.f32.mrf.mxu0
        %v728 = vadd.f32 %v504, %v727
        %v729 = vpop.f32.mrf.mxu0
        %730 = vmatprep.mubr.bf16.mxu0 %v559
        %731 = vmatmul.mubr.bf16.gmra.mxu0 %v558
        %v732 = vpop.f32.mrf.mxu0
        %v733 = vadd.f32 %v504, %v732
        %v734 = vpop.f32.mrf.mxu0
        %v735 = vpop.f32.mrf.mxu0
        %v736 = vadd.f32 %v504, %v735
        %v737 = vpop.f32.mrf.mxu0
        %738 = vmatprep.mubr.bf16.mxu0 %v561
        %739 = vmatmul.mubr.bf16.gmra.mxu0 %v560
        %v740 = vpop.f32.mrf.mxu0
        %v741 = vadd.f32 %v504, %v740
        %v742 = vpop.f32.mrf.mxu0
        %v743 = vpop.f32.mrf.mxu0
        %v744 = vadd.f32 %v504, %v743
        %v745 = vpop.f32.mrf.mxu0
        %746 = vmatprep.mubr.bf16.mxu0 %v563
        %747 = vmatmul.mubr.bf16.gmra.mxu0 %v562
        %v748 = vpop.f32.mrf.mxu0
        %v749 = vadd.f32 %v504, %v748
        %v750 = vpop.f32.mrf.mxu0
        %v751 = vpop.f32.mrf.mxu0
        %v752 = vadd.f32 %v504, %v751
        %v753 = vpop.f32.mrf.mxu0
        %754 = vmatprep.mubr.bf16.mxu0 %v565
        %755 = vmatmul.mubr.bf16.gmra.mxu0 %v564
        %v756 = vpop.f32.mrf.mxu0
        %v757 = vadd.f32 %v504, %v756
        %v758 = vpop.f32.mrf.mxu0
        %v759 = vpop.f32.mrf.mxu0
        %v760 = vadd.f32 %v504, %v759
        %v761 = vpop.f32.mrf.mxu0
        %762 = vmatprep.mubr.bf16.mxu0 %v567
        %763 = vmatmul.mubr.bf16.gmra.mxu0 %v566
        %v764 = vpop.f32.mrf.mxu0
        %v765 = vadd.f32 %v504, %v764
        %v766 = vpop.f32.mrf.mxu0
        %v767 = vpop.f32.mrf.mxu0
        %v768 = vadd.f32 %v504, %v767
        %v769 = vpop.f32.mrf.mxu0
        %770 = vmatprep.mubr.bf16.mxu0 %v569
        %771 = vmatmul.mubr.bf16.gmra.mxu0 %v568
        %v772 = vpop.f32.mrf.mxu0
        %v773 = vadd.f32 %v504, %v772
        %v774 = vpop.f32.mrf.mxu0
        %v775 = vpop.f32.mrf.mxu0
        %v776 = vadd.f32 %v504, %v775
        %v777 = vpop.f32.mrf.mxu0
        %778 = vdwg.mxu0
        %v779 = vmax.f32 %v717, 0.0
        %v780 = vmax.f32 %v720, 0.0
        %v781 = vmax.f32 %v725, 0.0
        %v782 = vmax.f32 %v728, 0.0
        %v783 = vmax.f32 %v733, 0.0
        %v784 = vmax.f32 %v736, 0.0
        %v785 = vmax.f32 %v741, 0.0
        %v786 = vmax.f32 %v744, 0.0
        %v787 = vmax.f32 %v749, 0.0
        %v788 = vmax.f32 %v752, 0.0
        %v789 = vmax.f32 %v757, 0.0
        %v790 = vmax.f32 %v760, 0.0
        %v791 = vmax.f32 %v765, 0.0
        %v792 = vmax.f32 %v768, 0.0
        %v793 = vmax.f32 %v773, 0.0
        %v794 = vmax.f32 %v776, 0.0
        %v795 = vpack.c.bf16 %v780, %v779
        %v796 = vpack.c.bf16 %v782, %v781
        %v797 = vpack.c.bf16 %v784, %v783
        %v798 = vpack.c.bf16 %v786, %v785
        %v799 = vpack.c.bf16 %v788, %v787
        %v800 = vpack.c.bf16 %v790, %v789
        %v801 = vpack.c.bf16 %v792, %v791
        %v802 = vpack.c.bf16 %v794, %v793
        %v803 = vld [vmem:[#allocation7] sm:$0xf]
        %v804 = vld [vmem:[#allocation7 + $0x4] sm:$0xf]
        %v805 = vld [vmem:[#allocation7 + $0x8] sm:$0xf]
        %v806 = vld [vmem:[#allocation7 + $0xc] sm:$0xf]
        %v807 = vld [vmem:[#allocation7 + $0x10] sm:$0xf]
        %v808 = vld [vmem:[#allocation7 + $0x14] sm:$0xf]
        %v809 = vld [vmem:[#allocation7 + $0x18] sm:$0xf]
        %v810 = vld [vmem:[#allocation7 + $0x1c] sm:$0xf]
        %v811 = vld [vmem:[#allocation7 + $0x20] sm:$0xf]
        %v812 = vld [vmem:[#allocation7 + $0x24] sm:$0xf]
        %v813 = vld [vmem:[#allocation7 + $0x28] sm:$0xf]
        %v814 = vld [vmem:[#allocation7 + $0x2c] sm:$0xf]
        %v815 = vld [vmem:[#allocation7 + $0x30] sm:$0xf]
        %v816 = vld [vmem:[#allocation7 + $0x34] sm:$0xf]
        %v817 = vld [vmem:[#allocation7 + $0x38] sm:$0xf]
        %v818 = vld [vmem:[#allocation7 + $0x3c] sm:$0xf]
        %v819 = vld [vmem:[%s4] sm:$0x1]
        %v821 = vlaneseq
        %v822 = vshrl.u32 %v821, 7
        %v823 = vsub.s32 0, %v822
        %v824 = vrot.slane %v819, %v823
        %v842 = vunpack.c.l.b16 %v803
        %v843 = vunpack.c.l.b16 %v804
        %v844 = vunpack.c.l.b16 %v805
        %v845 = vunpack.c.l.b16 %v806
        %v846 = vunpack.c.l.b16 %v807
        %v847 = vunpack.c.l.b16 %v808
        %v848 = vunpack.c.l.b16 %v809
        %v849 = vunpack.c.l.b16 %v810
        %v850 = vunpack.c.l.b16 %v811
        %v851 = vunpack.c.l.b16 %v812
        %v852 = vunpack.c.l.b16 %v813
        %v853 = vunpack.c.l.b16 %v814
        %v854 = vunpack.c.l.b16 %v815
        %v855 = vunpack.c.l.b16 %v816
        %v856 = vunpack.c.l.b16 %v817
        %v857 = vunpack.c.l.b16 %v818
        %v858 = vpack.c.b16 %v843, %v842
        %v859 = vpack.c.b16 %v845, %v844
        %v860 = vpack.c.b16 %v847, %v846
        %v861 = vpack.c.b16 %v849, %v848
        %v862 = vpack.c.b16 %v851, %v850
        %v863 = vpack.c.b16 %v853, %v852
        %v864 = vpack.c.b16 %v855, %v854
        %v865 = vpack.c.b16 %v857, %v856
        %874 = vmatprep.subr.bf16.mxu0 0
        %875 = vmatpush1.bf16.msra.mxu0 %v865
        %876 = vmatprep.subr.bf16.mxu0 0
        %877 = vmatpush1.bf16.msra.mxu0 %v864
        %878 = vmatprep.subr.bf16.mxu0 0
        %879 = vmatpush1.bf16.msra.mxu0 %v863
        %880 = vmatprep.subr.bf16.mxu0 0
        %881 = vmatpush1.bf16.msra.mxu0 %v862
        %882 = vmatprep.subr.bf16.mxu0 0
        %883 = vmatpush1.bf16.msra.mxu0 %v861
        %884 = vmatprep.subr.bf16.mxu0 0
        %885 = vmatpush1.bf16.msra.mxu0 %v860
        %886 = vmatprep.subr.bf16.mxu0 0
        %887 = vmatpush1.bf16.msra.mxu0 %v859
        %888 = vmatprep.subr.bf16.mxu0 0
        %889 = vmatpush1.bf16.msra.mxu0 %v858
        %890 = vmatprep.subr.bf16.mxu0 0
        %891 = vmatpush2.bf16.msra.mxu0 0
        %892 = vmatprep.subr.bf16.mxu0 0
        %893 = vmatpush2.bf16.msra.mxu0 0
        %894 = vmatprep.subr.bf16.mxu0 0
        %895 = vmatpush2.bf16.msra.mxu0 0
        %896 = vmatprep.subr.bf16.mxu0 0
        %897 = vmatpush2.bf16.msra.mxu0 0
        %898 = vmatprep.subr.bf16.mxu0 0
        %899 = vmatpush2.bf16.msra.mxu0 0
        %900 = vmatprep.subr.bf16.mxu0 0
        %901 = vmatpush2.bf16.msra.mxu0 0
        %902 = vmatprep.subr.bf16.mxu0 0
        %903 = vmatpush2.bf16.msra.mxu0 0
        %904 = vmatprep.subr.bf16.mxu0 0
        %905 = vmatpush2.bf16.msra.mxu0 0
        %906 = vmatprep.mubr.bf16.mxu0 0
        %907 = vmatmul.mubr.bf16.gmra.mxu0 %v795
        %v908 = vpop.f32.mrf.mxu0
        %v909 = vadd.f32 %v824, %v908
        %v910 = vpop.f32.mrf.mxu0
        %v911 = vpop.f32.mrf.mxu0
        %v912 = vadd.f32 %v824, %v911
        %v913 = vpop.f32.mrf.mxu0
        %914 = vmatprep.mubr.bf16.mxu0 0
        %915 = vmatmul.mubr.bf16.gmra.mxu0 %v796
        %v916 = vpop.f32.mrf.mxu0
        %v917 = vadd.f32 %v824, %v916
        %v918 = vpop.f32.mrf.mxu0
        %v919 = vpop.f32.mrf.mxu0
        %v920 = vadd.f32 %v824, %v919
        %v921 = vpop.f32.mrf.mxu0
        %922 = vmatprep.mubr.bf16.mxu0 0
        %923 = vmatmul.mubr.bf16.gmra.mxu0 %v797
        %v924 = vpop.f32.mrf.mxu0
        %v925 = vadd.f32 %v824, %v924
        %v926 = vpop.f32.mrf.mxu0
        %v927 = vpop.f32.mrf.mxu0
        %v928 = vadd.f32 %v824, %v927
        %v929 = vpop.f32.mrf.mxu0
        %930 = vmatprep.mubr.bf16.mxu0 0
        %931 = vmatmul.mubr.bf16.gmra.mxu0 %v798
        %v932 = vpop.f32.mrf.mxu0
        %v933 = vadd.f32 %v824, %v932
        %v934 = vpop.f32.mrf.mxu0
        %v935 = vpop.f32.mrf.mxu0
        %v936 = vadd.f32 %v824, %v935
        %v937 = vpop.f32.mrf.mxu0
        %938 = vmatprep.mubr.bf16.mxu0 0
        %939 = vmatmul.mubr.bf16.gmra.mxu0 %v799
        %v940 = vpop.f32.mrf.mxu0
        %v941 = vadd.f32 %v824, %v940
        %v942 = vpop.f32.mrf.mxu0
        %v943 = vpop.f32.mrf.mxu0
        %v944 = vadd.f32 %v824, %v943
        %v945 = vpop.f32.mrf.mxu0
        %946 = vmatprep.mubr.bf16.mxu0 0
        %947 = vmatmul.mubr.bf16.gmra.mxu0 %v800
        %v948 = vpop.f32.mrf.mxu0
        %v949 = vadd.f32 %v824, %v948
        %v950 = vpop.f32.mrf.mxu0
        %v951 = vpop.f32.mrf.mxu0
        %v952 = vadd.f32 %v824, %v951
        %v953 = vpop.f32.mrf.mxu0
        %954 = vmatprep.mubr.bf16.mxu0 0
        %955 = vmatmul.mubr.bf16.gmra.mxu0 %v801
        %v956 = vpop.f32.mrf.mxu0
        %v957 = vadd.f32 %v824, %v956
        %v958 = vpop.f32.mrf.mxu0
        %v959 = vpop.f32.mrf.mxu0
        %v960 = vadd.f32 %v824, %v959
        %v961 = vpop.f32.mrf.mxu0
        %962 = vmatprep.mubr.bf16.mxu0 0
        %963 = vmatmul.mubr.bf16.gmra.mxu0 %v802
        %v964 = vpop.f32.mrf.mxu0
        %v965 = vadd.f32 %v824, %v964
        %v966 = vpop.f32.mrf.mxu0
        %v967 = vpop.f32.mrf.mxu0
        %v968 = vadd.f32 %v824, %v967
        %v969 = vpop.f32.mrf.mxu0
        %970 = vdwg.mxu0
        %v971 = vmax.f32 %v909, 0.0
        %v972 = vmax.f32 %v912, 0.0
        %v973 = vmax.f32 %v917, 0.0
        %v974 = vmax.f32 %v920, 0.0
        %v975 = vmax.f32 %v925, 0.0
        %v976 = vmax.f32 %v928, 0.0
        %v977 = vmax.f32 %v933, 0.0
        %v978 = vmax.f32 %v936, 0.0
        %v979 = vmax.f32 %v941, 0.0
        %v980 = vmax.f32 %v944, 0.0
        %v981 = vmax.f32 %v949, 0.0
        %v982 = vmax.f32 %v952, 0.0
        %v983 = vmax.f32 %v957, 0.0
        %v984 = vmax.f32 %v960, 0.0
        %v985 = vmax.f32 %v965, 0.0
        %v986 = vmax.f32 %v968, 0.0
        %v987 = vpack.c.bf16 %v972, %v971
        %v988 = vpack.c.bf16 %v974, %v973
        %v989 = vpack.c.bf16 %v976, %v975
        %v990 = vpack.c.bf16 %v978, %v977
        %v991 = vpack.c.bf16 %v980, %v979
        %v992 = vpack.c.bf16 %v982, %v981
        %v993 = vpack.c.bf16 %v984, %v983
        %v994 = vpack.c.bf16 %v986, %v985
        %v995 = vld [vmem:[#allocation8] sm:$0xff]
        %v996 = vld [vmem:[#allocation8 + $0x8] sm:$0xff]
        %v997 = vld [vmem:[#allocation8 + $0x10] sm:$0xff]
        %v998 = vld [vmem:[#allocation8 + $0x18] sm:$0xff]
        %v999 = vld [vmem:[#allocation8 + $0x20] sm:$0xff]
        %v1000 = vld [vmem:[#allocation8 + $0x28] sm:$0xff]
        %v1001 = vld [vmem:[#allocation8 + $0x30] sm:$0xff]
        %v1002 = vld [vmem:[#allocation8 + $0x38] sm:$0xff]
        %v1003 = vld [vmem:[#allocation8 + $0x40] sm:$0xff]
        %v1004 = vld [vmem:[#allocation8 + $0x48] sm:$0xff]
        %v1005 = vld [vmem:[#allocation8 + $0x50] sm:$0xff]
        %v1006 = vld [vmem:[#allocation8 + $0x58] sm:$0xff]
        %v1007 = vld [vmem:[#allocation8 + $0x60] sm:$0xff]
        %v1008 = vld [vmem:[#allocation8 + $0x68] sm:$0xff]
        %v1009 = vld [vmem:[#allocation8 + $0x70] sm:$0xff]
        %v1010 = vld [vmem:[#allocation8 + $0x78] sm:$0xff]
        %v1011 = vld [vmem:[%s6] sm:$0x3]
        %v1013 = vlaneseq
        %v1014 = vshrl.u32 %v1013, 7
        %v1015 = vsub.s32 0, %v1014
        %v1016 = vrot.slane %v1011, %v1015
        %v1017 = vlaneseq
        %v1018 = vshrl.u32 %v1017, 7
        %v1019 = vsub.s32 1, %v1018
        %v1020 = vrot.slane %v1011, %v1019
        %v1039 = vunpack.c.l.b16 %v995
        %v1040 = vunpack.c.h.b16 %v995
        %v1041 = vunpack.c.l.b16 %v996
        %v1042 = vunpack.c.h.b16 %v996
        %v1043 = vunpack.c.l.b16 %v997
        %v1044 = vunpack.c.h.b16 %v997
        %v1045 = vunpack.c.l.b16 %v998
        %v1046 = vunpack.c.h.b16 %v998
        %v1047 = vunpack.c.l.b16 %v999
        %v1048 = vunpack.c.h.b16 %v999
        %v1049 = vunpack.c.l.b16 %v1000
        %v1050 = vunpack.c.h.b16 %v1000
        %v1051 = vunpack.c.l.b16 %v1001
        %v1052 = vunpack.c.h.b16 %v1001
        %v1053 = vunpack.c.l.b16 %v1002
        %v1054 = vunpack.c.h.b16 %v1002
        %v1055 = vunpack.c.l.b16 %v1003
        %v1056 = vunpack.c.h.b16 %v1003
        %v1057 = vunpack.c.l.b16 %v1004
        %v1058 = vunpack.c.h.b16 %v1004
        %v1059 = vunpack.c.l.b16 %v1005
        %v1060 = vunpack.c.h.b16 %v1005
        %v1061 = vunpack.c.l.b16 %v1006
        %v1062 = vunpack.c.h.b16 %v1006
        %v1063 = vunpack.c.l.b16 %v1007
        %v1064 = vunpack.c.h.b16 %v1007
        %v1065 = vunpack.c.l.b16 %v1008
        %v1066 = vunpack.c.h.b16 %v1008
        %v1067 = vunpack.c.l.b16 %v1009
        %v1068 = vunpack.c.h.b16 %v1009
        %v1069 = vunpack.c.l.b16 %v1010
        %v1070 = vunpack.c.h.b16 %v1010
        %v1071 = vpack.c.b16 %v1041, %v1039
        %v1072 = vpack.c.b16 %v1042, %v1040
        %v1073 = vpack.c.b16 %v1045, %v1043
        %v1074 = vpack.c.b16 %v1046, %v1044
        %v1075 = vpack.c.b16 %v1049, %v1047
        %v1076 = vpack.c.b16 %v1050, %v1048
        %v1077 = vpack.c.b16 %v1053, %v1051
        %v1078 = vpack.c.b16 %v1054, %v1052
        %v1079 = vpack.c.b16 %v1057, %v1055
        %v1080 = vpack.c.b16 %v1058, %v1056
        %v1081 = vpack.c.b16 %v1061, %v1059
        %v1082 = vpack.c.b16 %v1062, %v1060
        %v1083 = vpack.c.b16 %v1065, %v1063
        %v1084 = vpack.c.b16 %v1066, %v1064
        %v1085 = vpack.c.b16 %v1069, %v1067
        %v1086 = vpack.c.b16 %v1070, %v1068
        %1103 = vmatprep.subr.bf16.mxu0 %v1086
        %1104 = vmatpush1.bf16.msra.mxu0 %v1085
        %1105 = vmatprep.subr.bf16.mxu0 %v1084
        %1106 = vmatpush1.bf16.msra.mxu0 %v1083
        %1107 = vmatprep.subr.bf16.mxu0 %v1082
        %1108 = vmatpush1.bf16.msra.mxu0 %v1081
        %1109 = vmatprep.subr.bf16.mxu0 %v1080
        %1110 = vmatpush1.bf16.msra.mxu0 %v1079
        %1111 = vmatprep.subr.bf16.mxu0 %v1078
        %1112 = vmatpush1.bf16.msra.mxu0 %v1077
        %1113 = vmatprep.subr.bf16.mxu0 %v1076
        %1114 = vmatpush1.bf16.msra.mxu0 %v1075
        %1115 = vmatprep.subr.bf16.mxu0 %v1074
        %1116 = vmatpush1.bf16.msra.mxu0 %v1073
        %1117 = vmatprep.subr.bf16.mxu0 %v1072
        %1118 = vmatpush1.bf16.msra.mxu0 %v1071
        %1119 = vmatprep.subr.bf16.mxu0 0
        %1120 = vmatpush2.bf16.msra.mxu0 0
        %1121 = vmatprep.subr.bf16.mxu0 0
        %1122 = vmatpush2.bf16.msra.mxu0 0
        %1123 = vmatprep.subr.bf16.mxu0 0
        %1124 = vmatpush2.bf16.msra.mxu0 0
        %1125 = vmatprep.subr.bf16.mxu0 0
        %1126 = vmatpush2.bf16.msra.mxu0 0
        %1127 = vmatprep.subr.bf16.mxu0 0
        %1128 = vmatpush2.bf16.msra.mxu0 0
        %1129 = vmatprep.subr.bf16.mxu0 0
        %1130 = vmatpush2.bf16.msra.mxu0 0
        %1131 = vmatprep.subr.bf16.mxu0 0
        %1132 = vmatpush2.bf16.msra.mxu0 0
        %1133 = vmatprep.subr.bf16.mxu0 0
        %1134 = vmatpush2.bf16.msra.mxu0 0
        %1135 = vmatprep.mubr.bf16.mxu0 0
        %1136 = vmatmul.mubr.bf16.gmra.mxu0 %v987
        %v1137 = vpop.f32.mrf.mxu0
        %v1138 = vadd.f32 %v1016, %v1137
        %v1139 = vpop.f32.mrf.mxu0
        %v1140 = vadd.f32 %v1020, %v1139
        %v1141 = vpop.f32.mrf.mxu0
        %v1142 = vadd.f32 %v1016, %v1141
        %v1143 = vpop.f32.mrf.mxu0
        %v1144 = vadd.f32 %v1020, %v1143
        %1145 = vmatprep.mubr.bf16.mxu0 0
        %1146 = vmatmul.mubr.bf16.gmra.mxu0 %v988
        %v1147 = vpop.f32.mrf.mxu0
        %v1148 = vadd.f32 %v1016, %v1147
        %v1149 = vpop.f32.mrf.mxu0
        %v1150 = vadd.f32 %v1020, %v1149
        %v1151 = vpop.f32.mrf.mxu0
        %v1152 = vadd.f32 %v1016, %v1151
        %v1153 = vpop.f32.mrf.mxu0
        %v1154 = vadd.f32 %v1020, %v1153
        %1155 = vmatprep.mubr.bf16.mxu0 0
        %1156 = vmatmul.mubr.bf16.gmra.mxu0 %v989
        %v1157 = vpop.f32.mrf.mxu0
        %v1158 = vadd.f32 %v1016, %v1157
        %v1159 = vpop.f32.mrf.mxu0
        %v1160 = vadd.f32 %v1020, %v1159
        %v1161 = vpop.f32.mrf.mxu0
        %v1162 = vadd.f32 %v1016, %v1161
        %v1163 = vpop.f32.mrf.mxu0
        %v1164 = vadd.f32 %v1020, %v1163
        %1165 = vmatprep.mubr.bf16.mxu0 0
        %1166 = vmatmul.mubr.bf16.gmra.mxu0 %v990
        %v1167 = vpop.f32.mrf.mxu0
        %v1168 = vadd.f32 %v1016, %v1167
        %v1169 = vpop.f32.mrf.mxu0
        %v1170 = vadd.f32 %v1020, %v1169
        %v1171 = vpop.f32.mrf.mxu0
        %v1172 = vadd.f32 %v1016, %v1171
        %v1173 = vpop.f32.mrf.mxu0
        %v1174 = vadd.f32 %v1020, %v1173
        %1175 = vmatprep.mubr.bf16.mxu0 0
        %1176 = vmatmul.mubr.bf16.gmra.mxu0 %v991
        %v1177 = vpop.f32.mrf.mxu0
        %v1178 = vadd.f32 %v1016, %v1177
        %v1179 = vpop.f32.mrf.mxu0
        %v1180 = vadd.f32 %v1020, %v1179
        %v1181 = vpop.f32.mrf.mxu0
        %v1182 = vadd.f32 %v1016, %v1181
        %v1183 = vpop.f32.mrf.mxu0
        %v1184 = vadd.f32 %v1020, %v1183
        %1185 = vmatprep.mubr.bf16.mxu0 0
        %1186 = vmatmul.mubr.bf16.gmra.mxu0 %v992
        %v1187 = vpop.f32.mrf.mxu0
        %v1188 = vadd.f32 %v1016, %v1187
        %v1189 = vpop.f32.mrf.mxu0
        %v1190 = vadd.f32 %v1020, %v1189
        %v1191 = vpop.f32.mrf.mxu0
        %v1192 = vadd.f32 %v1016, %v1191
        %v1193 = vpop.f32.mrf.mxu0
        %v1194 = vadd.f32 %v1020, %v1193
        %1195 = vmatprep.mubr.bf16.mxu0 0
        %1196 = vmatmul.mubr.bf16.gmra.mxu0 %v993
        %v1197 = vpop.f32.mrf.mxu0
        %v1198 = vadd.f32 %v1016, %v1197
        %v1199 = vpop.f32.mrf.mxu0
        %v1200 = vadd.f32 %v1020, %v1199
        %v1201 = vpop.f32.mrf.mxu0
        %v1202 = vadd.f32 %v1016, %v1201
        %v1203 = vpop.f32.mrf.mxu0
        %v1204 = vadd.f32 %v1020, %v1203
        %1205 = vmatprep.mubr.bf16.mxu0 0
        %1206 = vmatmul.mubr.bf16.gmra.mxu0 %v994
        %v1207 = vpop.f32.mrf.mxu0
        %v1208 = vadd.f32 %v1016, %v1207
        %v1209 = vpop.f32.mrf.mxu0
        %v1210 = vadd.f32 %v1020, %v1209
        %v1211 = vpop.f32.mrf.mxu0
        %v1212 = vadd.f32 %v1016, %v1211
        %v1213 = vpop.f32.mrf.mxu0
        %v1214 = vadd.f32 %v1020, %v1213
        %1215 = vdwg.mxu0
        %v1216 = vld [vmem:[%s403] sm:$0xf]
        %v1217 = vld [vmem:[%s403 + $0x4] sm:$0xf]
        %v1218 = vld [vmem:[%s403 + $0x8] sm:$0xf]
        %v1219 = vld [vmem:[%s403 + $0xc] sm:$0xf]
        %v1220 = vld [vmem:[%s403 + $0x10] sm:$0xf]
        %v1221 = vld [vmem:[%s403 + $0x14] sm:$0xf]
        %v1222 = vld [vmem:[%s403 + $0x18] sm:$0xf]
        %v1223 = vld [vmem:[%s403 + $0x1c] sm:$0xf]
        %v1224 = vld [vmem:[%s403 + $0x20] sm:$0xf]
        %v1225 = vld [vmem:[%s403 + $0x24] sm:$0xf]
        %v1226 = vld [vmem:[%s403 + $0x28] sm:$0xf]
        %v1227 = vld [vmem:[%s403 + $0x2c] sm:$0xf]
        %v1228 = vld [vmem:[%s403 + $0x30] sm:$0xf]
        %v1229 = vld [vmem:[%s403 + $0x34] sm:$0xf]
        %v1230 = vld [vmem:[%s403 + $0x38] sm:$0xf]
        %v1231 = vld [vmem:[%s403 + $0x3c] sm:$0xf]
        %v1232 = vld [vmem:[#allocation11] sm:$0xff]
        %v1233 = vld [vmem:[#allocation11 + $0x8] sm:$0xff]
        %v1234 = vld [vmem:[#allocation11 + $0x10] sm:$0xff]
        %v1235 = vld [vmem:[#allocation11 + $0x18] sm:$0xff]
        %v1236 = vld [vmem:[#allocation11 + $0x20] sm:$0xff]
        %v1237 = vld [vmem:[#allocation11 + $0x28] sm:$0xff]
        %v1238 = vld [vmem:[#allocation11 + $0x30] sm:$0xff]
        %v1239 = vld [vmem:[#allocation11 + $0x38] sm:$0xff]
        %v1240 = vld [vmem:[#allocation11 + $0x40] sm:$0xff]
        %v1241 = vld [vmem:[#allocation11 + $0x48] sm:$0xff]
        %v1242 = vld [vmem:[#allocation11 + $0x50] sm:$0xff]
        %v1243 = vld [vmem:[#allocation11 + $0x58] sm:$0xff]
        %v1244 = vld [vmem:[#allocation11 + $0x60] sm:$0xff]
        %v1245 = vld [vmem:[#allocation11 + $0x68] sm:$0xff]
        %v1246 = vld [vmem:[#allocation11 + $0x70] sm:$0xff]
        %v1247 = vld [vmem:[#allocation11 + $0x78] sm:$0xff]
        %v1264 = vunpack.c.l.b16 %v1216
        %v1265 = vunpack.c.l.b16 %v1217
        %v1266 = vunpack.c.l.b16 %v1218
        %v1267 = vunpack.c.l.b16 %v1219
        %v1268 = vunpack.c.l.b16 %v1220
        %v1269 = vunpack.c.l.b16 %v1221
        %v1270 = vunpack.c.l.b16 %v1222
        %v1271 = vunpack.c.l.b16 %v1223
        %v1272 = vunpack.c.l.b16 %v1224
        %v1273 = vunpack.c.l.b16 %v1225
        %v1274 = vunpack.c.l.b16 %v1226
        %v1275 = vunpack.c.l.b16 %v1227
        %v1276 = vunpack.c.l.b16 %v1228
        %v1277 = vunpack.c.l.b16 %v1229
        %v1278 = vunpack.c.l.b16 %v1230
        %v1279 = vunpack.c.l.b16 %v1231
        %v1280 = vpack.c.b16 %v1265, %v1264
        %v1281 = vpack.c.b16 %v1267, %v1266
        %v1282 = vpack.c.b16 %v1269, %v1268
        %v1283 = vpack.c.b16 %v1271, %v1270
        %v1284 = vpack.c.b16 %v1273, %v1272
        %v1285 = vpack.c.b16 %v1275, %v1274
        %v1286 = vpack.c.b16 %v1277, %v1276
        %v1287 = vpack.c.b16 %v1279, %v1278
        %v1312 = vunpack.c.l.b16 %v1232
        %v1313 = vunpack.c.h.b16 %v1232
        %v1314 = vunpack.c.l.b16 %v1233
        %v1315 = vunpack.c.h.b16 %v1233
        %v1316 = vunpack.c.l.b16 %v1234
        %v1317 = vunpack.c.h.b16 %v1234
        %v1318 = vunpack.c.l.b16 %v1235
        %v1319 = vunpack.c.h.b16 %v1235
        %v1320 = vunpack.c.l.b16 %v1236
        %v1321 = vunpack.c.h.b16 %v1236
        %v1322 = vunpack.c.l.b16 %v1237
        %v1323 = vunpack.c.h.b16 %v1237
        %v1324 = vunpack.c.l.b16 %v1238
        %v1325 = vunpack.c.h.b16 %v1238
        %v1326 = vunpack.c.l.b16 %v1239
        %v1327 = vunpack.c.h.b16 %v1239
        %v1328 = vunpack.c.l.b16 %v1240
        %v1329 = vunpack.c.h.b16 %v1240
        %v1330 = vunpack.c.l.b16 %v1241
        %v1331 = vunpack.c.h.b16 %v1241
        %v1332 = vunpack.c.l.b16 %v1242
        %v1333 = vunpack.c.h.b16 %v1242
        %v1334 = vunpack.c.l.b16 %v1243
        %v1335 = vunpack.c.h.b16 %v1243
        %v1336 = vunpack.c.l.b16 %v1244
        %v1337 = vunpack.c.h.b16 %v1244
        %v1338 = vunpack.c.l.b16 %v1245
        %v1339 = vunpack.c.h.b16 %v1245
        %v1340 = vunpack.c.l.b16 %v1246
        %v1341 = vunpack.c.h.b16 %v1246
        %v1342 = vunpack.c.l.b16 %v1247
        %v1343 = vunpack.c.h.b16 %v1247
        %v1344 = vpack.c.b16 %v1314, %v1312
        %v1345 = vpack.c.b16 %v1315, %v1313
        %v1346 = vpack.c.b16 %v1318, %v1316
        %v1347 = vpack.c.b16 %v1319, %v1317
        %v1348 = vpack.c.b16 %v1322, %v1320
        %v1349 = vpack.c.b16 %v1323, %v1321
        %v1350 = vpack.c.b16 %v1326, %v1324
        %v1351 = vpack.c.b16 %v1327, %v1325
        %v1352 = vpack.c.b16 %v1330, %v1328
        %v1353 = vpack.c.b16 %v1331, %v1329
        %v1354 = vpack.c.b16 %v1334, %v1332
        %v1355 = vpack.c.b16 %v1335, %v1333
        %v1356 = vpack.c.b16 %v1338, %v1336
        %v1357 = vpack.c.b16 %v1339, %v1337
        %v1358 = vpack.c.b16 %v1342, %v1340
        %v1359 = vpack.c.b16 %v1343, %v1341
        %1376 = vmatprep.subr.bf16.mxu0 %v1359
        %1377 = vmatpush1.bf16.msra.mxu0 %v1358
        %1378 = vmatprep.subr.bf16.mxu0 %v1357
        %1379 = vmatpush1.bf16.msra.mxu0 %v1356
        %1380 = vmatprep.subr.bf16.mxu0 %v1355
        %1381 = vmatpush1.bf16.msra.mxu0 %v1354
        %1382 = vmatprep.subr.bf16.mxu0 %v1353
        %1383 = vmatpush1.bf16.msra.mxu0 %v1352
        %1384 = vmatprep.subr.bf16.mxu0 %v1351
        %1385 = vmatpush1.bf16.msra.mxu0 %v1350
        %1386 = vmatprep.subr.bf16.mxu0 %v1349
        %1387 = vmatpush1.bf16.msra.mxu0 %v1348
        %1388 = vmatprep.subr.bf16.mxu0 %v1347
        %1389 = vmatpush1.bf16.msra.mxu0 %v1346
        %1390 = vmatprep.subr.bf16.mxu0 %v1345
        %1391 = vmatpush1.bf16.msra.mxu0 %v1344
        %1392 = vmatprep.subr.bf16.mxu0 0
        %1393 = vmatpush2.bf16.msra.mxu0 0
        %1394 = vmatprep.subr.bf16.mxu0 0
        %1395 = vmatpush2.bf16.msra.mxu0 0
        %1396 = vmatprep.subr.bf16.mxu0 0
        %1397 = vmatpush2.bf16.msra.mxu0 0
        %1398 = vmatprep.subr.bf16.mxu0 0
        %1399 = vmatpush2.bf16.msra.mxu0 0
        %1400 = vmatprep.subr.bf16.mxu0 0
        %1401 = vmatpush2.bf16.msra.mxu0 0
        %1402 = vmatprep.subr.bf16.mxu0 0
        %1403 = vmatpush2.bf16.msra.mxu0 0
        %1404 = vmatprep.subr.bf16.mxu0 0
        %1405 = vmatpush2.bf16.msra.mxu0 0
        %1406 = vmatprep.subr.bf16.mxu0 0
        %1407 = vmatpush2.bf16.msra.mxu0 0
        %1408 = vmatprep.mubr.bf16.mxu0 0
        %1409 = vmatmul.mubr.bf16.gmra.mxu0 %v1280
        %v1410 = vpop.f32.mrf.mxu0
        %v1411 = vadd.f32 0.0, %v1410
        %v1412 = vpop.f32.mrf.mxu0
        %v1413 = vadd.f32 0.0, %v1412
        %v1414 = vpop.f32.mrf.mxu0
        %v1415 = vadd.f32 0.0, %v1414
        %v1416 = vpop.f32.mrf.mxu0
        %v1417 = vadd.f32 0.0, %v1416
        %1418 = vmatprep.mubr.bf16.mxu0 0
        %1419 = vmatmul.mubr.bf16.gmra.mxu0 %v1281
        %v1420 = vpop.f32.mrf.mxu0
        %v1421 = vadd.f32 0.0, %v1420
        %v1422 = vpop.f32.mrf.mxu0
        %v1423 = vadd.f32 0.0, %v1422
        %v1424 = vpop.f32.mrf.mxu0
        %v1425 = vadd.f32 0.0, %v1424
        %v1426 = vpop.f32.mrf.mxu0
        %v1427 = vadd.f32 0.0, %v1426
        %1428 = vmatprep.mubr.bf16.mxu0 0
        %1429 = vmatmul.mubr.bf16.gmra.mxu0 %v1282
        %v1430 = vpop.f32.mrf.mxu0
        %v1431 = vadd.f32 0.0, %v1430
        %v1432 = vpop.f32.mrf.mxu0
        %v1433 = vadd.f32 0.0, %v1432
        %v1434 = vpop.f32.mrf.mxu0
        %v1435 = vadd.f32 0.0, %v1434
        %v1436 = vpop.f32.mrf.mxu0
        %v1437 = vadd.f32 0.0, %v1436
        %1438 = vmatprep.mubr.bf16.mxu0 0
        %1439 = vmatmul.mubr.bf16.gmra.mxu0 %v1283
        %v1440 = vpop.f32.mrf.mxu0
        %v1441 = vadd.f32 0.0, %v1440
        %v1442 = vpop.f32.mrf.mxu0
        %v1443 = vadd.f32 0.0, %v1442
        %v1444 = vpop.f32.mrf.mxu0
        %v1445 = vadd.f32 0.0, %v1444
        %v1446 = vpop.f32.mrf.mxu0
        %v1447 = vadd.f32 0.0, %v1446
        %1448 = vmatprep.mubr.bf16.mxu0 0
        %1449 = vmatmul.mubr.bf16.gmra.mxu0 %v1284
        %v1450 = vpop.f32.mrf.mxu0
        %v1451 = vadd.f32 0.0, %v1450
        %v1452 = vpop.f32.mrf.mxu0
        %v1453 = vadd.f32 0.0, %v1452
        %v1454 = vpop.f32.mrf.mxu0
        %v1455 = vadd.f32 0.0, %v1454
        %v1456 = vpop.f32.mrf.mxu0
        %v1457 = vadd.f32 0.0, %v1456
        %1458 = vmatprep.mubr.bf16.mxu0 0
        %1459 = vmatmul.mubr.bf16.gmra.mxu0 %v1285
        %v1460 = vpop.f32.mrf.mxu0
        %v1461 = vadd.f32 0.0, %v1460
        %v1462 = vpop.f32.mrf.mxu0
        %v1463 = vadd.f32 0.0, %v1462
        %v1464 = vpop.f32.mrf.mxu0
        %v1465 = vadd.f32 0.0, %v1464
        %v1466 = vpop.f32.mrf.mxu0
        %v1467 = vadd.f32 0.0, %v1466
        %1468 = vmatprep.mubr.bf16.mxu0 0
        %1469 = vmatmul.mubr.bf16.gmra.mxu0 %v1286
        %v1470 = vpop.f32.mrf.mxu0
        %v1471 = vadd.f32 0.0, %v1470
        %v1472 = vpop.f32.mrf.mxu0
        %v1473 = vadd.f32 0.0, %v1472
        %v1474 = vpop.f32.mrf.mxu0
        %v1475 = vadd.f32 0.0, %v1474
        %v1476 = vpop.f32.mrf.mxu0
        %v1477 = vadd.f32 0.0, %v1476
        %1478 = vmatprep.mubr.bf16.mxu0 0
        %1479 = vmatmul.mubr.bf16.gmra.mxu0 %v1287
        %v1480 = vpop.f32.mrf.mxu0
        %v1481 = vadd.f32 0.0, %v1480
        %v1482 = vpop.f32.mrf.mxu0
        %v1483 = vadd.f32 0.0, %v1482
        %v1484 = vpop.f32.mrf.mxu0
        %v1485 = vadd.f32 0.0, %v1484
        %v1486 = vpop.f32.mrf.mxu0
        %v1487 = vadd.f32 0.0, %v1486
        %1488 = vdwg.mxu0
        %v1489 = vadd.f32 %v1138, %v1411
        %v1490 = vadd.f32 %v1140, %v1413
        %v1491 = vadd.f32 %v1142, %v1415
        %v1492 = vadd.f32 %v1144, %v1417
        %v1493 = vadd.f32 %v1148, %v1421
        %v1494 = vadd.f32 %v1150, %v1423
        %v1495 = vadd.f32 %v1152, %v1425
        %v1496 = vadd.f32 %v1154, %v1427
        %v1497 = vadd.f32 %v1158, %v1431
        %v1498 = vadd.f32 %v1160, %v1433
        %v1499 = vadd.f32 %v1162, %v1435
        %v1500 = vadd.f32 %v1164, %v1437
        %v1501 = vadd.f32 %v1168, %v1441
        %v1502 = vadd.f32 %v1170, %v1443
        %v1503 = vadd.f32 %v1172, %v1445
        %v1504 = vadd.f32 %v1174, %v1447
        %v1505 = vadd.f32 %v1178, %v1451
        %v1506 = vadd.f32 %v1180, %v1453
        %v1507 = vadd.f32 %v1182, %v1455
        %v1508 = vadd.f32 %v1184, %v1457
        %v1509 = vadd.f32 %v1188, %v1461
        %v1510 = vadd.f32 %v1190, %v1463
        %v1511 = vadd.f32 %v1192, %v1465
        %v1512 = vadd.f32 %v1194, %v1467
        %v1513 = vadd.f32 %v1198, %v1471
        %v1514 = vadd.f32 %v1200, %v1473
        %v1515 = vadd.f32 %v1202, %v1475
        %v1516 = vadd.f32 %v1204, %v1477
        %v1517 = vadd.f32 %v1208, %v1481
        %v1518 = vadd.f32 %v1210, %v1483
        %v1519 = vadd.f32 %v1212, %v1485
        %v1520 = vadd.f32 %v1214, %v1487
        %1521 = vst [vmem:[%s446] sm:$0xff] %v1489
        %1522 = vst [vmem:[%s446 + $0x8] sm:$0xff] %v1490
        %1523 = vst [vmem:[%s446 + $0x10] sm:$0xff] %v1491
        %1524 = vst [vmem:[%s446 + $0x18] sm:$0xff] %v1492
        %1525 = vst [vmem:[%s446 + $0x20] sm:$0xff] %v1493
        %1526 = vst [vmem:[%s446 + $0x28] sm:$0xff] %v1494
        %1527 = vst [vmem:[%s446 + $0x30] sm:$0xff] %v1495
        %1528 = vst [vmem:[%s446 + $0x38] sm:$0xff] %v1496
        %1529 = vst [vmem:[%s446 + $0x40] sm:$0xff] %v1497
        %1530 = vst [vmem:[%s446 + $0x48] sm:$0xff] %v1498
        %1531 = vst [vmem:[%s446 + $0x50] sm:$0xff] %v1499
        %1532 = vst [vmem:[%s446 + $0x58] sm:$0xff] %v1500
        %1533 = vst [vmem:[%s446 + $0x60] sm:$0xff] %v1501
        %1534 = vst [vmem:[%s446 + $0x68] sm:$0xff] %v1502
        %1535 = vst [vmem:[%s446 + $0x70] sm:$0xff] %v1503
        %1536 = vst [vmem:[%s446 + $0x78] sm:$0xff] %v1504
        %1537 = vst [vmem:[%s446 + $0x80] sm:$0xff] %v1505
        %1538 = vst [vmem:[%s446 + $0x88] sm:$0xff] %v1506
        %1539 = vst [vmem:[%s446 + $0x90] sm:$0xff] %v1507
        %1540 = vst [vmem:[%s446 + $0x98] sm:$0xff] %v1508
        %1541 = vst [vmem:[%s446 + $0xa0] sm:$0xff] %v1509
        %1542 = vst [vmem:[%s446 + $0xa8] sm:$0xff] %v1510
        %1543 = vst [vmem:[%s446 + $0xb0] sm:$0xff] %v1511
        %1544 = vst [vmem:[%s446 + $0xb8] sm:$0xff] %v1512
        %1545 = vst [vmem:[%s446 + $0xc0] sm:$0xff] %v1513
        %1546 = vst [vmem:[%s446 + $0xc8] sm:$0xff] %v1514
        %1547 = vst [vmem:[%s446 + $0xd0] sm:$0xff] %v1515
        %1548 = vst [vmem:[%s446 + $0xd8] sm:$0xff] %v1516
        %1549 = vst [vmem:[%s446 + $0xe0] sm:$0xff] %v1517
        %1550 = vst [vmem:[%s446 + $0xe8] sm:$0xff] %v1518
        %1551 = vst [vmem:[%s446 + $0xf0] sm:$0xff] %v1519
        %1552 = vst [vmem:[%s446 + $0xf8] sm:$0xff] %v1520
        %s1553 = sand.u32 %s235, 1
        %s1554 = scalar_lea.sflag [#allocation4], %s1553
        %s1555 = sand.u32 %s235, 1
        %s1556 = smul.addr %s1555, 256
        %s1557 = scalar_lea.vmem [#allocation12], %s1556
        // Predicated region
        $region81: #{tpu_custom_call.1} parent=55 // pred_check
          %p1558 = pneg %p245
        $region82: #{tpu_custom_call.1} parent=55 // pred_check_branch
          %1560 = sbr.rel (%p1558) target = $region84
        $region83: #{tpu_custom_call.1} parent=55 // pred_region
          %s1561 = smul.u32 16, %s28
          %s1563 = ssub.s32 4096, 4096
          %1564 = vsyncadd %s1554, %s1563
          %s1565 = smul.addr %s1561, 2
          %s1566 = smul.addr %s1565, 128
          %s1567 = scalar_lea.hbm %s9, %s1566
          %s1568 = sshll.u32 %s1557, 4
          %s1569 = int_to_ptr.vmem [resolvable:$true] %s1568
          %1574 = dma.vmem_to_hbm [thread:$0]  %s1569, 4096, %s1567, %s1554, 256, 256, 16
        $region84: #{tpu_custom_call.1} parent=55 // pred_fallthru
          _
      $region56: #{tpu_custom_call.1} parent=5 // pred_fallthru
        _
      %p1575 = scmp.le.s32.totalorder 2, %s23
      // Predicated region
      $region85: #{tpu_custom_call.1} parent=5 // pred_check
        %p1576 = pneg %p1575
      $region86: #{tpu_custom_call.1} parent=5 // pred_check_branch
        %1578 = sbr.rel (%p1576) target = $region88
      $region87: #{tpu_custom_call.1} parent=5 // pred_region
        %s1579 = ssub.s32 %s23, 2
        // Predicated region
        $region89: #{tpu_custom_call.1} parent=87 // pred_check
          %p1580 = pneg %p251
        $region90: #{tpu_custom_call.1} parent=87 // pred_check_branch
          %1582 = sbr.rel (%p1580) target = $region92
        $region91: #{tpu_custom_call.1} parent=87 // pred_region
          %s1583 = sand.u32 %s236, 1
          %s1584 = scalar_lea.sflag [#allocation4], %s1583
          %s1585 = sand.u32 %s236, 1
          %s1586 = smul.addr %s1585, 256
          %s1587 = scalar_lea.vmem [#allocation12], %s1586
          %1588 = dma.done %s1584, 4096
        $region92: #{tpu_custom_call.1} parent=87 // pred_fallthru
          _
      $region88: #{tpu_custom_call.1} parent=5 // pred_fallthru
        _
    $region6: #{tpu_custom_call.1} parent=1 // loop_footer
      %s27 = sadd.s32 1, %s23
    $region7: #{tpu_custom_call.1} parent=1 // loop_footer_branch
      %22 = sbr.rel target = $region3
    $region8: #{tpu_custom_call.1} parent=1 // loop_exit
      _
    %1589 = vsyncpa [#allocation3], 1
    %s1590 = scalar_lea.sflag [#allocation3], 1
    %1591 = vsyncpa %s1590, 1
    %1592 = vsyncpa [#allocation6], 1
    %1593 = vsyncpa [#allocation9], 1
    %1594 = vsyncpa [#allocation4], 1
    %s1595 = scalar_lea.sflag [#allocation4], 1
    %1596 = vsyncpa %s1595, 1

</llo_original>
